<compile_context>
chip_gen: v7x
topology: tpu7x:2x2x1
jax: 0.10.0
libtpu: 0.0.40
codegen_flags: <defaults>
</compile_context>

<pallas_src>
import math

import jax
import jax.numpy as jnp
from jax import lax
from jax.experimental import pallas as pl
from jax.experimental.pallas import tpu as pltpu

# ----------------------- synthetic "checkpoint" config -----------------------
VOCAB = 128
MAX_POS = 16
TYPE_VOCAB = 2
HIDDEN = 32
FFN = 64
NUM_LAYERS = 2
NUM_HEADS = 1          # config choice for the synthetic checkpoint
NUM_LABELS = 1         # cross-encoder ranker: one similarity score per pair
SEQ = 8                # padded/truncated (query, document) pair length
LN_EPS = 1e-12
NEG_INF = -1e9

# Documents processed per grid step.  1 => grid=(num_docs,) and v7x splits the
# documents across its two TensorCores.  Raise it (e.g. 16) at real scale so
# the per-step matmul M-dimension approaches the MXU height on v6e/v7x.
DOCS_PER_BLOCK = 1

# bf16 matmul operands for the bf16-native v6e/v7x MXU.  On v5e (no bf16
# VPU/EUP and a tiny win from the bf16 MXU at these shapes) set to float32.
MATMUL_DTYPE = jnp.bfloat16

# -------- packed-slab layout (per-layer vectors / embedding+head vectors) ----
_LVEC_FIELDS = (("bqkv", 3 * HIDDEN), ("bo", HIDDEN), ("ln1g", HIDDEN),
                ("ln1b", HIDDEN), ("b1", FFN), ("b2", HIDDEN),
                ("ln2g", HIDDEN), ("ln2b", HIDDEN))
_LVEC_OFF = {}
_off = 0
for _name, _w in _LVEC_FIELDS:
    _LVEC_OFF[_name] = (_off, _off + _w)
    _off += _w
LVEC_W = _off                                    # 352

_HVEC_FIELDS = (("emb_ln_g", HIDDEN), ("emb_ln_b", HIDDEN),
                ("bp", HIDDEN), ("bc", NUM_LABELS))
_HVEC_OFF = {}
_off = 0
for _name, _w in _HVEC_FIELDS:
    _HVEC_OFF[_name] = (_off, _off + _w)
    _off += _w
HVEC_W = _off                                    # 97


# ----------------------------- shared math ----------------------------------
# Used both inside the Pallas kernel (on VMEM-resident tiles) and in the
# pure-JAX reference, so the semantics match (modulo approx reciprocal).

def _layernorm(x, g, b):
    mu = jnp.mean(x, axis=-1, keepdims=True)
    var = jnp.mean(jnp.square(x - mu), axis=-1, keepdims=True)
    return (x - mu) * jax.lax.rsqrt(var + LN_EPS) * g + b


def _gelu_tanh(x):
    c = math.sqrt(2.0 / math.pi)
    return 0.5 * x * (1.0 + jnp.tanh(c * (x + 0.044715 * x * x * x)))


def _softmax_last(x, approx=False):
    m = jnp.max(x, axis=-1, keepdims=True)
    e = jnp.exp(x - m)
    s = jnp.sum(e, axis=-1, keepdims=True)
    if approx:
        # EUP reciprocal: separate issue slot, effectively free next to MXU/VPU
        return e * pl.reciprocal(s, approx=True)
    return e / s


def _layer_math(x, bias, wqkv, bqkv, wo, bo, ln1g, ln1b, w1, b1, w2, b2,
                ln2g, ln2b, *, approx=False):
    """One encoder layer.  x: [R, H] f32, bias: [R, R] additive attn bias."""
    xb = x.astype(MATMUL_DTYPE)
    # fused Q|K|V projection: one MXU matmul with N = 3H instead of three
    qkv = jnp.dot(xb, wqkv, preferred_element_type=jnp.float32) + bqkv
    qkv_m = qkv.astype(MATMUL_DTYPE)             # single cast, then slice
    q = qkv_m[:, :HIDDEN]
    k = qkv_m[:, HIDDEN:2 * HIDDEN]
    v = qkv_m[:, 2 * HIDDEN:]
    scale = 1.0 / math.sqrt(HIDDEN // NUM_HEADS)
    # contract last axes directly (no explicit transpose -> no XLU vxpose)
    scores = lax.dot_general(
        q, k, dimension_numbers=(((1,), (1,)), ((), ())),
        preferred_element_type=jnp.float32) * scale + bias
    probs = _softmax_last(scores, approx=approx)
    ctx = jnp.dot(probs.astype(MATMUL_DTYPE), v,
                  preferred_element_type=jnp.float32)
    attn = jnp.dot(ctx.astype(MATMUL_DTYPE), wo,
                   preferred_element_type=jnp.float32) + bo
    h1 = _layernorm(x + attn, ln1g, ln1b)
    ff = jnp.dot(h1.astype(MATMUL_DTYPE), w1,
                 preferred_element_type=jnp.float32) + b1
    ff = _gelu_tanh(ff)
    ff = jnp.dot(ff.astype(MATMUL_DTYPE), w2,
                 preferred_element_type=jnp.float32) + b2
    return _layernorm(h1 + ff, ln2g, ln2b)


def _head_math(cls, wp, bp, wc, bc):
    pooled = jnp.tanh(jnp.dot(cls.astype(MATMUL_DTYPE), wp,
                              preferred_element_type=jnp.float32) + bp)
    return jnp.dot(pooled.astype(MATMUL_DTYPE), wc,
                   preferred_element_type=jnp.float32) + bc


# ------------------------------ Pallas kernel --------------------------------

def _ranker_kernel(lens_ref,                       # SMEM [num_docs] int32
                   emb_ref,                        # [R, H] f32 block
                   lvec_ref,                       # [L, LVEC_W] f32 slab
                   hvec_ref,                       # [1, HVEC_W] f32 slab
                   wqkv_ref, wo_ref, w1_ref, w2_ref,   # stacked weights
                   whead_ref,                      # [H, H+NUM_LABELS]
                   o_ref):                         # [1, D_BLK, NUM_LABELS]
    d = pl.program_id(0)
    R = DOCS_PER_BLOCK * SEQ

    def hv(name):
        a, b = _HVEC_OFF[name]
        return hvec_ref[:, a:b]

    def lv(l, name):
        a, b = _LVEC_OFF[name]
        return lvec_ref[l:l + 1, a:b]

    # embedding LayerNorm on this document block's [R, H] activations
    x = _layernorm(emb_ref[...], hv("emb_ln_g"), hv("emb_ln_b"))

    # Additive attention bias built in-kernel: block-diagonal across documents
    # in the block + key padding from the per-document valid lengths (SMEM).
    # Assumes tokenizer-style contiguous right padding.
    col = lax.broadcasted_iota(jnp.int32, (R, R), 1)
    key_valid = None
    for kd in range(DOCS_PER_BLOCK):
        length = lens_ref[d * DOCS_PER_BLOCK + kd]
        term = (col >= kd * SEQ) & (col < kd * SEQ + length)
        key_valid = term if key_valid is None else (key_valid | term)
    if DOCS_PER_BLOCK > 1:
        row = lax.broadcasted_iota(jnp.int32, (R, R), 0)
        key_valid = key_valid & ((row // SEQ) == (col // SEQ))
    bias = jnp.where(key_valid, 0.0, NEG_INF).astype(jnp.float32)

    # All encoder layers run here; stacked weights stay resident in VMEM.
    # Static unrolled loop (short fixed trip count -> full LLO visibility).
    for l in range(NUM_LAYERS):
        x = _layer_math(x, bias,
                        wqkv_ref[l], lv(l, "bqkv"),
                        wo_ref[l], lv(l, "bo"),
                        lv(l, "ln1g"), lv(l, "ln1b"),
                        w1_ref[l], lv(l, "b1"),
                        w2_ref[l], lv(l, "b2"),
                        lv(l, "ln2g"), lv(l, "ln2b"),
                        approx=True)

    # [CLS] pooling: row 0 of every document in the block (static slices; no
    # selector matmul, no extra input DMA).
    if DOCS_PER_BLOCK == 1:
        cls = x[0:1, :]
    else:
        cls = jnp.concatenate(
            [x[kd * SEQ:kd * SEQ + 1, :] for kd in range(DOCS_PER_BLOCK)],
            axis=0)

    # pooler + classifier head fused into the same kernel
    logits = _head_math(cls, whead_ref[:, 0:HIDDEN], hv("bp"),
                        whead_ref[:, HIDDEN:HIDDEN + NUM_LABELS], hv("bc"))
    o_ref[0] = logits


# ------------------------------ model glue -----------------------------------

def init_params(key):
    """Synthetic 'checkpoint' in HF-like per-tensor layout."""
    keys = iter(jax.random.split(key, 32))

    def w(shape, dtype=MATMUL_DTYPE, scale=0.02):
        return (scale * jax.random.normal(next(keys), shape,
                                          jnp.float32)).astype(dtype)

    L = NUM_LAYERS
    return dict(
        word_emb=w((VOCAB, HIDDEN), jnp.float32),
        pos_emb=w((MAX_POS, HIDDEN), jnp.float32),
        type_emb=w((TYPE_VOCAB, HIDDEN), jnp.float32),
        emb_ln_g=jnp.ones((1, HIDDEN), jnp.float32),
        emb_ln_b=jnp.zeros((1, HIDDEN), jnp.float32),
        wqkv=w((L, HIDDEN, 3 * HIDDEN)),            # fused Q|K|V projection
        bqkv=w((L, 1, 3 * HIDDEN), jnp.float32),
        wo=w((L, HIDDEN, HIDDEN)),
        bo=w((L, 1, HIDDEN), jnp.float32),
        ln1g=jnp.ones((L, 1, HIDDEN), jnp.float32),
        ln1b=jnp.zeros((L, 1, HIDDEN), jnp.float32),
        w1=w((L, HIDDEN, FFN)),
        b1=w((L, 1, FFN), jnp.float32),
        w2=w((L, FFN, HIDDEN)),
        b2=w((L, 1, HIDDEN), jnp.float32),
        ln2g=jnp.ones((L, 1, HIDDEN), jnp.float32),
        ln2b=jnp.zeros((L, 1, HIDDEN), jnp.float32),
        wp=w((HIDDEN, HIDDEN)),
        bp=w((1, HIDDEN), jnp.float32),
        wc=w((HIDDEN, NUM_LABELS)),
        bc=w((1, NUM_LABELS), jnp.float32),
    )


def pack_params(p):
    """One-time packing of the tiny vectors/weights into a few HBM operands."""
    L = NUM_LAYERS
    layer_vec = jnp.concatenate(
        [p[name].reshape(L, -1).astype(jnp.float32)
         for name, _ in _LVEC_FIELDS], axis=-1)                 # [L, 352]
    head_vec = jnp.concatenate(
        [p[name].reshape(1, -1).astype(jnp.float32)
         for name, _ in _HVEC_FIELDS], axis=-1)                 # [1, 97]
    w_head = jnp.concatenate([p["wp"], p["wc"]], axis=-1)       # [H, H+1]
    return dict(word_emb=p["word_emb"], pos_emb=p["pos_emb"],
                type_emb=p["type_emb"],
                layer_vec=layer_vec, head_vec=head_vec, w_head=w_head,
                wqkv=p["wqkv"], wo=p["wo"], w1=p["w1"], w2=p["w2"])


def _embed(params, input_ids, token_type_ids):
    # TODO(synk): at real vocab/hidden sizes fold this gather into the kernel
    # (input_ids via scalar prefetch + manual row DMA from word_emb in HBM).
    B, S = input_ids.shape
    return (params["word_emb"][input_ids]
            + params["pos_emb"][jnp.arange(S)][None, :, :]
            + params["type_emb"][token_type_ids])


def ranker_forward(packed, input_ids, token_type_ids, attention_mask):
    """Single Pallas forward over a parallel doc-block grid.

    Returns logits [num_docs, NUM_LABELS]."""
    B, S = input_ids.shape
    assert S == SEQ and B % DOCS_PER_BLOCK == 0
    R = DOCS_PER_BLOCK * SEQ
    n_blocks = B // DOCS_PER_BLOCK

    emb = _embed(packed, input_ids, token_type_ids)
    emb = emb.reshape(B * S, HIDDEN).astype(jnp.float32)

    # per-document valid lengths (tokenizer right-padding); scalar-prefetched
    lens = jnp.sum(attention_mask, axis=1).astype(jnp.int32)          # [B]

    L = NUM_LAYERS
    grid_spec = pltpu.PrefetchScalarGridSpec(
        num_scalar_prefetch=1,                 # lens -> SMEM
        grid=(n_blocks,),
        in_specs=[
            # per-block activations
            pl.BlockSpec((R, HIDDEN), lambda d, lens: (d, 0)),
            # packed vector slabs + stacked weights: constant index_map ->
            # DMA'd once, VMEM-resident for the whole grid
            pl.BlockSpec((L, LVEC_W), lambda d, lens: (0, 0)),
            pl.BlockSpec((1, HVEC_W), lambda d, lens: (0, 0)),
            pl.BlockSpec((L, HIDDEN, 3 * HIDDEN), lambda d, lens: (0, 0, 0)),
            pl.BlockSpec((L, HIDDEN, HIDDEN), lambda d, lens: (0, 0, 0)),
            pl.BlockSpec((L, HIDDEN, FFN), lambda d, lens: (0, 0, 0)),
            pl.BlockSpec((L, FFN, HIDDEN), lambda d, lens: (0, 0, 0)),
            pl.BlockSpec((HIDDEN, HIDDEN + NUM_LABELS),
                         lambda d, lens: (0, 0)),
        ],
        out_specs=pl.BlockSpec((1, DOCS_PER_BLOCK, NUM_LABELS),
                               lambda d, lens: (d, 0, 0)),
    )

    out = pl.pallas_call(
        _ranker_kernel,
        out_shape=jax.ShapeDtypeStruct((n_blocks, DOCS_PER_BLOCK, NUM_LABELS),
                                       jnp.float32),
        grid_spec=grid_spec,
        compiler_params=pltpu.CompilerParams(
            # "parallel": v7x shards the document blocks across its 2 TCs
            dimension_semantics=("parallel",),
            vmem_limit_bytes=32 * 1024 * 1024,
        ),
    )(lens, emb, packed["layer_vec"], packed["head_vec"],
      packed["wqkv"], packed["wo"], packed["w1"], packed["w2"],
      packed["w_head"])

    return out.reshape(B, NUM_LABELS)


def ranker_forward_ref(params, input_ids, token_type_ids, attention_mask):
    """Pure-JAX reference with identical math (per-document attention)."""
    B, S = input_ids.shape
    emb = _embed(params, input_ids, token_type_ids).reshape(B * S, HIDDEN)
    x = _layernorm(emb.astype(jnp.float32),
                   params["emb_ln_g"], params["emb_ln_b"])
    x = x.reshape(B, S, HIDDEN)
    bias = jnp.broadcast_to((1.0 - attention_mask)[:, None, :] * NEG_INF,
                            (B, S, S)).astype(jnp.float32)
    for l in range(NUM_LAYERS):
        wts = (params["wqkv"][l], params["bqkv"][l], params["wo"][l],
               params["bo"][l], params["ln1g"][l], params["ln1b"][l],
               params["w1"][l], params["b1"][l], params["w2"][l],
               params["b2"][l], params["ln2g"][l], params["ln2b"][l])
        x = jax.vmap(lambda xb, bb: _layer_math(xb, bb, *wts))(x, bias)
    cls = x[:, 0, :]
    return _head_math(cls, params["wp"], params["bp"],
                      params["wc"], params["bc"])


# --------------------------------- main --------------------------------------

if __name__ == "__main__":
    key = jax.random.PRNGKey(0)
    k_params, k_ids = jax.random.split(key)

    num_docs = 2          # documents paired with the same query
    seq = SEQ             # padded/truncated (query, document) pair length

    # TODO(synk): AutoTokenizer(query, documents) is host-side string processing
    # with no Pallas equivalent; its output (ids / type ids / mask) is synthesized.
    input_ids = jax.random.randint(k_ids, (num_docs, seq), 0, VOCAB,
                                   dtype=jnp.int32)
    token_type_ids = jnp.broadcast_to(
        (jnp.arange(seq) >= seq // 2).astype(jnp.int32), (num_docs, seq))
    # one padded position in document 1 to exercise the mask path
    attention_mask = jnp.ones((num_docs, seq), jnp.float32).at[1, -1].set(0.0)

    params = init_params(k_params)
    packed = pack_params(params)      # one-time packing into a few HBM slabs

    logits = jax.block_until_ready(
        ranker_forward(packed, input_ids, token_type_ids, attention_mask))
    ref = jax.block_until_ready(
        ranker_forward_ref(params, input_ids, token_type_ids, attention_mask))

    assert logits.shape == (num_docs, NUM_LABELS), logits.shape
    assert bool(jnp.all(jnp.isfinite(logits)))
    if not bool(jnp.allclose(logits, ref, atol=1e-2, rtol=1e-2)):
        raise RuntimeError(f"Pallas vs reference mismatch: {logits} vs {ref}")

    print("KERNEL_OK")
</pallas_src>

<mosaic_0001>
module attributes {stable_mosaic.version = 11 : i64} {
  func.func @_ranker_kernel(%arg0: i32, %arg1: memref<2xi32, #tpu.memory_space<smem>>, %arg2: memref<8x32xf32, #tpu.memory_space<vmem>>, %arg3: memref<2x352xf32, #tpu.memory_space<vmem>>, %arg4: memref<1x97xf32, #tpu.memory_space<vmem>>, %arg5: memref<2x32x96xbf16, #tpu.memory_space<vmem>>, %arg6: memref<2x32x32xbf16, #tpu.memory_space<vmem>>, %arg7: memref<2x32x64xbf16, #tpu.memory_space<vmem>>, %arg8: memref<2x64x32xbf16, #tpu.memory_space<vmem>>, %arg9: memref<32x33xbf16, #tpu.memory_space<vmem>>, %arg10: memref<1x1x1xf32, #tpu.memory_space<vmem>>) attributes {dimension_semantics = [#tpu.dimension_semantics<parallel>], iteration_bounds = array<i64: 2>, scalar_prefetch = 1 : i64, scratch_operands = 0 : i64, tpu.core_type = #tpu.core_type<tc>, window_params = [{transform_indices = @transform_0, window_bounds = array<i64: 8, 32>}, {pipeline_mode = #tpu.pipeline_mode<synchronous>, transform_indices = @transform_1, window_bounds = array<i64: 2, 352>}, {pipeline_mode = #tpu.pipeline_mode<synchronous>, transform_indices = @transform_2, window_bounds = array<i64: 1, 97>}, {pipeline_mode = #tpu.pipeline_mode<synchronous>, transform_indices = @transform_3, window_bounds = array<i64: 2, 32, 96>}, {pipeline_mode = #tpu.pipeline_mode<synchronous>, transform_indices = @transform_4, window_bounds = array<i64: 2, 32, 32>}, {pipeline_mode = #tpu.pipeline_mode<synchronous>, transform_indices = @transform_5, window_bounds = array<i64: 2, 32, 64>}, {pipeline_mode = #tpu.pipeline_mode<synchronous>, transform_indices = @transform_6, window_bounds = array<i64: 2, 64, 32>}, {pipeline_mode = #tpu.pipeline_mode<synchronous>, transform_indices = @transform_7, window_bounds = array<i64: 32, 33>}, {transform_indices = @transform_8, window_bounds = array<i64: 1, 1, 1>}]} {
    %c0 = arith.constant 0 : index
    %c0_0 = arith.constant 0 : index
    %0 = vector.load %arg2[%c0, %c0_0] : memref<8x32xf32, #tpu.memory_space<vmem>>, vector<8x32xf32>
    %c0_1 = arith.constant 0 : index
    %c0_2 = arith.constant 0 : index
    %1 = vector.load %arg4[%c0_1, %c0_2] : memref<1x97xf32, #tpu.memory_space<vmem>>, vector<1x32xf32>
    %c0_3 = arith.constant 0 : index
    %c32 = arith.constant 32 : index
    %2 = vector.load %arg4[%c0_3, %c32] : memref<1x97xf32, #tpu.memory_space<vmem>>, vector<1x32xf32>
    %cst = arith.constant dense<0.000000e+00> : vector<8xf32>
    %3 = vector.multi_reduction <add>, %0, %cst [1] : vector<8x32xf32> to vector<8xf32>
    %4 = vector.shape_cast %3 : vector<8xf32> to vector<8x1xf32>
    %cst_4 = arith.constant 3.200000e+01 : f32
    %5 = vector.broadcast %cst_4 : f32 to vector<8x1xf32>
    %6 = arith.divf %4, %5 : vector<8x1xf32>
    %7 = vector.broadcast %6 : vector<8x1xf32> to vector<8x32xf32>
    %8 = arith.subf %0, %7 : vector<8x32xf32>
    %9 = arith.mulf %8, %8 : vector<8x32xf32>
    %cst_5 = arith.constant dense<0.000000e+00> : vector<8xf32>
    %10 = vector.multi_reduction <add>, %9, %cst_5 [1] : vector<8x32xf32> to vector<8xf32>
    %11 = vector.shape_cast %10 : vector<8xf32> to vector<8x1xf32>
    %cst_6 = arith.constant 3.200000e+01 : f32
    %12 = vector.broadcast %cst_6 : f32 to vector<8x1xf32>
    %13 = arith.divf %11, %12 : vector<8x1xf32>
    %14 = vector.broadcast %6 : vector<8x1xf32> to vector<8x32xf32>
    %15 = arith.subf %0, %14 : vector<8x32xf32>
    %cst_7 = arith.constant 9.99999996E-13 : f32
    %16 = vector.broadcast %cst_7 : f32 to vector<8x1xf32>
    %17 = arith.addf %13, %16 : vector<8x1xf32>
    %18 = math.rsqrt %17 : vector<8x1xf32>
    %19 = vector.broadcast %18 : vector<8x1xf32> to vector<8x32xf32>
    %20 = arith.mulf %15, %19 : vector<8x32xf32>
    %21 = vector.broadcast %1 : vector<1x32xf32> to vector<8x32xf32>
    %22 = arith.mulf %20, %21 : vector<8x32xf32>
    %23 = vector.broadcast %2 : vector<1x32xf32> to vector<8x32xf32>
    %24 = arith.addf %22, %23 : vector<8x32xf32>
    %25 = tpu.iota {dimensions = array<i32: 1>} : vector<8x8xi32>
    %c1_i32 = arith.constant 1 : i32
    %26 = arith.muli %arg0, %c1_i32 : i32
    %c0_i32 = arith.constant 0 : i32
    %27 = arith.addi %26, %c0_i32 : i32
    %28 = arith.index_cast %27 : i32 to index
    %29 = memref.load %arg1[%28] : memref<2xi32, #tpu.memory_space<smem>>
    %c0_i32_8 = arith.constant 0 : i32
    %30 = vector.broadcast %c0_i32_8 : i32 to vector<8x8xi32>
    %31 = arith.cmpi sge, %25, %30 : vector<8x8xi32>
    %c0_i32_9 = arith.constant 0 : i32
    %32 = arith.addi %c0_i32_9, %29 : i32
    %33 = vector.broadcast %32 : i32 to vector<8x8xi32>
    %34 = arith.cmpi slt, %25, %33 : vector<8x8xi32>
    %35 = arith.andi %31, %34 : vector<8x8xi1>
    %cst_10 = arith.constant 0.000000e+00 : f32
    %cst_11 = arith.constant -1.000000e+09 : f32
    %36 = vector.broadcast %cst_10 : f32 to vector<8x8xf32>
    %37 = vector.broadcast %cst_11 : f32 to vector<8x8xf32>
    %38 = arith.select %35, %36, %37 : vector<8x8xi1>, vector<8x8xf32>
    %c0_12 = arith.constant 0 : index
    %c0_13 = arith.constant 0 : index
    %c0_14 = arith.constant 0 : index
    %39 = vector.load %arg5[%c0_12, %c0_13, %c0_14] : memref<2x32x96xbf16, #tpu.memory_space<vmem>>, vector<1x32x96xbf16>
    %40 = vector.shape_cast %39 : vector<1x32x96xbf16> to vector<32x96xbf16>
    %c0_15 = arith.constant 0 : index
    %c0_16 = arith.constant 0 : index
    %41 = vector.load %arg3[%c0_15, %c0_16] : memref<2x352xf32, #tpu.memory_space<vmem>>, vector<1x96xf32>
    %c0_17 = arith.constant 0 : index
    %c0_18 = arith.constant 0 : index
    %c0_19 = arith.constant 0 : index
    %42 = vector.load %arg6[%c0_17, %c0_18, %c0_19] : memref<2x32x32xbf16, #tpu.memory_space<vmem>>, vector<1x32x32xbf16>
    %43 = vector.shape_cast %42 : vector<1x32x32xbf16> to vector<32x32xbf16>
    %c0_20 = arith.constant 0 : index
    %c96 = arith.constant 96 : index
    %44 = vector.load %arg3[%c0_20, %c96] : memref<2x352xf32, #tpu.memory_space<vmem>>, vector<1x32xf32>
    %c0_21 = arith.constant 0 : index
    %c128 = arith.constant 128 : index
    %45 = vector.load %arg3[%c0_21, %c128] : memref<2x352xf32, #tpu.memory_space<vmem>>, vector<1x32xf32>
    %c0_22 = arith.constant 0 : index
    %c160 = arith.constant 160 : index
    %46 = vector.load %arg3[%c0_22, %c160] : memref<2x352xf32, #tpu.memory_space<vmem>>, vector<1x32xf32>
    %c0_23 = arith.constant 0 : index
    %c0_24 = arith.constant 0 : index
    %c0_25 = arith.constant 0 : index
    %47 = vector.load %arg7[%c0_23, %c0_24, %c0_25] : memref<2x32x64xbf16, #tpu.memory_space<vmem>>, vector<1x32x64xbf16>
    %48 = vector.shape_cast %47 : vector<1x32x64xbf16> to vector<32x64xbf16>
    %c0_26 = arith.constant 0 : index
    %c192 = arith.constant 192 : index
    %49 = vector.load %arg3[%c0_26, %c192] : memref<2x352xf32, #tpu.memory_space<vmem>>, vector<1x64xf32>
    %c0_27 = arith.constant 0 : index
    %c0_28 = arith.constant 0 : index
    %c0_29 = arith.constant 0 : index
    %50 = vector.load %arg8[%c0_27, %c0_28, %c0_29] : memref<2x64x32xbf16, #tpu.memory_space<vmem>>, vector<1x64x32xbf16>
    %51 = vector.shape_cast %50 : vector<1x64x32xbf16> to vector<64x32xbf16>
    %c0_30 = arith.constant 0 : index
    %c256 = arith.constant 256 : index
    %52 = vector.load %arg3[%c0_30, %c256] : memref<2x352xf32, #tpu.memory_space<vmem>>, vector<1x32xf32>
    %c0_31 = arith.constant 0 : index
    %c288 = arith.constant 288 : index
    %53 = vector.load %arg3[%c0_31, %c288] : memref<2x352xf32, #tpu.memory_space<vmem>>, vector<1x32xf32>
    %c0_32 = arith.constant 0 : index
    %c320 = arith.constant 320 : index
    %54 = vector.load %arg3[%c0_32, %c320] : memref<2x352xf32, #tpu.memory_space<vmem>>, vector<1x32xf32>
    %55 = arith.truncf %24 : vector<8x32xf32> to vector<8x32xbf16>
    %cst_33 = arith.constant dense<0.000000e+00> : vector<8x96xf32>
    %56 = tpu.matmul %55, %40, %cst_33 {dimension_numbers = #tpu.dot_dimension_numbers<[1], [0], [0], [1], [0, 0, 1, 1], [], []>} : vector<8x32xbf16>, vector<32x96xbf16>, vector<8x96xf32> -> vector<8x96xf32>
    %57 = vector.broadcast %41 : vector<1x96xf32> to vector<8x96xf32>
    %58 = arith.addf %56, %57 : vector<8x96xf32>
    %59 = arith.truncf %58 : vector<8x96xf32> to vector<8x96xbf16>
    %60 = vector.extract_strided_slice %59 {offsets = [0, 0], sizes = [8, 32], strides = [1, 1]} : vector<8x96xbf16> to vector<8x32xbf16>
    %61 = vector.extract_strided_slice %59 {offsets = [0, 32], sizes = [8, 32], strides = [1, 1]} : vector<8x96xbf16> to vector<8x32xbf16>
    %62 = vector.extract_strided_slice %59 {offsets = [0, 64], sizes = [8, 32], strides = [1, 1]} : vector<8x96xbf16> to vector<8x32xbf16>
    %cst_34 = arith.constant dense<0.000000e+00> : vector<8x8xf32>
    %63 = tpu.matmul %60, %61, %cst_34 {dimension_numbers = #tpu.dot_dimension_numbers<[1], [1], [0], [0], [0, 0, 1, 0], [], []>} : vector<8x32xbf16>, vector<8x32xbf16>, vector<8x8xf32> -> vector<8x8xf32>
    %cst_35 = arith.constant 0.176776692 : f32
    %64 = vector.broadcast %cst_35 : f32 to vector<8x8xf32>
    %65 = arith.mulf %63, %64 : vector<8x8xf32>
    %66 = arith.addf %65, %38 : vector<8x8xf32>
    %cst_36 = arith.constant dense<0xFF800000> : vector<8xf32>
    %67 = vector.multi_reduction <maximumf>, %66, %cst_36 [1] : vector<8x8xf32> to vector<8xf32>
    %68 = vector.shape_cast %67 : vector<8xf32> to vector<8x1xf32>
    %69 = vector.broadcast %68 : vector<8x1xf32> to vector<8x8xf32>
    %70 = arith.subf %66, %69 : vector<8x8xf32>
    %71 = math.exp %70 : vector<8x8xf32>
    %cst_37 = arith.constant dense<0.000000e+00> : vector<8xf32>
    %72 = vector.multi_reduction <add>, %71, %cst_37 [1] : vector<8x8xf32> to vector<8xf32>
    %73 = vector.shape_cast %72 : vector<8xf32> to vector<8x1xf32>
    %74 = tpu.reciprocal %73 {approx = true} : vector<8x1xf32> -> vector<8x1xf32>
    %75 = vector.broadcast %74 : vector<8x1xf32> to vector<8x8xf32>
    %76 = arith.mulf %71, %75 : vector<8x8xf32>
    %77 = arith.truncf %76 : vector<8x8xf32> to vector<8x8xbf16>
    %cst_38 = arith.constant dense<0.000000e+00> : vector<8x32xf32>
    %78 = tpu.matmul %77, %62, %cst_38 {dimension_numbers = #tpu.dot_dimension_numbers<[1], [0], [0], [1], [0, 0, 1, 1], [], []>} : vector<8x8xbf16>, vector<8x32xbf16>, vector<8x32xf32> -> vector<8x32xf32>
    %79 = arith.truncf %78 : vector<8x32xf32> to vector<8x32xbf16>
    %cst_39 = arith.constant dense<0.000000e+00> : vector<8x32xf32>
    %80 = tpu.matmul %79, %43, %cst_39 {dimension_numbers = #tpu.dot_dimension_numbers<[1], [0], [0], [1], [0, 0, 1, 1], [], []>} : vector<8x32xbf16>, vector<32x32xbf16>, vector<8x32xf32> -> vector<8x32xf32>
    %81 = vector.broadcast %44 : vector<1x32xf32> to vector<8x32xf32>
    %82 = arith.addf %80, %81 : vector<8x32xf32>
    %83 = arith.addf %24, %82 : vector<8x32xf32>
    %cst_40 = arith.constant dense<0.000000e+00> : vector<8xf32>
    %84 = vector.multi_reduction <add>, %83, %cst_40 [1] : vector<8x32xf32> to vector<8xf32>
    %85 = vector.shape_cast %84 : vector<8xf32> to vector<8x1xf32>
    %cst_41 = arith.constant 3.200000e+01 : f32
    %86 = vector.broadcast %cst_41 : f32 to vector<8x1xf32>
    %87 = arith.divf %85, %86 : vector<8x1xf32>
    %88 = vector.broadcast %87 : vector<8x1xf32> to vector<8x32xf32>
    %89 = arith.subf %83, %88 : vector<8x32xf32>
    %90 = arith.mulf %89, %89 : vector<8x32xf32>
    %cst_42 = arith.constant dense<0.000000e+00> : vector<8xf32>
    %91 = vector.multi_reduction <add>, %90, %cst_42 [1] : vector<8x32xf32> to vector<8xf32>
    %92 = vector.shape_cast %91 : vector<8xf32> to vector<8x1xf32>
    %cst_43 = arith.constant 3.200000e+01 : f32
    %93 = vector.broadcast %cst_43 : f32 to vector<8x1xf32>
    %94 = arith.divf %92, %93 : vector<8x1xf32>
    %95 = vector.broadcast %87 : vector<8x1xf32> to vector<8x32xf32>
    %96 = arith.subf %83, %95 : vector<8x32xf32>
    %cst_44 = arith.constant 9.99999996E-13 : f32
    %97 = vector.broadcast %cst_44 : f32 to vector<8x1xf32>
    %98 = arith.addf %94, %97 : vector<8x1xf32>
    %99 = math.rsqrt %98 : vector<8x1xf32>
    %100 = vector.broadcast %99 : vector<8x1xf32> to vector<8x32xf32>
    %101 = arith.mulf %96, %100 : vector<8x32xf32>
    %102 = vector.broadcast %45 : vector<1x32xf32> to vector<8x32xf32>
    %103 = arith.mulf %101, %102 : vector<8x32xf32>
    %104 = vector.broadcast %46 : vector<1x32xf32> to vector<8x32xf32>
    %105 = arith.addf %103, %104 : vector<8x32xf32>
    %106 = arith.truncf %105 : vector<8x32xf32> to vector<8x32xbf16>
    %cst_45 = arith.constant dense<0.000000e+00> : vector<8x64xf32>
    %107 = tpu.matmul %106, %48, %cst_45 {dimension_numbers = #tpu.dot_dimension_numbers<[1], [0], [0], [1], [0, 0, 1, 1], [], []>} : vector<8x32xbf16>, vector<32x64xbf16>, vector<8x64xf32> -> vector<8x64xf32>
    %108 = vector.broadcast %49 : vector<1x64xf32> to vector<8x64xf32>
    %109 = arith.addf %107, %108 : vector<8x64xf32>
    %cst_46 = arith.constant 5.000000e-01 : f32
    %110 = vector.broadcast %cst_46 : f32 to vector<8x64xf32>
    %111 = arith.mulf %110, %109 : vector<8x64xf32>
    %cst_47 = arith.constant 4.471500e-02 : f32
    %112 = vector.broadcast %cst_47 : f32 to vector<8x64xf32>
    %113 = arith.mulf %112, %109 : vector<8x64xf32>
    %114 = arith.mulf %113, %109 : vector<8x64xf32>
    %115 = arith.mulf %114, %109 : vector<8x64xf32>
    %116 = arith.addf %109, %115 : vector<8x64xf32>
    %cst_48 = arith.constant 0.797884583 : f32
    %117 = vector.broadcast %cst_48 : f32 to vector<8x64xf32>
    %118 = arith.mulf %117, %116 : vector<8x64xf32>
    %119 = math.tanh %118 : vector<8x64xf32>
    %cst_49 = arith.constant 1.000000e+00 : f32
    %120 = vector.broadcast %cst_49 : f32 to vector<8x64xf32>
    %121 = arith.addf %120, %119 : vector<8x64xf32>
    %122 = arith.mulf %111, %121 : vector<8x64xf32>
    %123 = arith.truncf %122 : vector<8x64xf32> to vector<8x64xbf16>
    %cst_50 = arith.constant dense<0.000000e+00> : vector<8x32xf32>
    %124 = tpu.matmul %123, %51, %cst_50 {dimension_numbers = #tpu.dot_dimension_numbers<[1], [0], [0], [1], [0, 0, 1, 1], [], []>} : vector<8x64xbf16>, vector<64x32xbf16>, vector<8x32xf32> -> vector<8x32xf32>
    %125 = vector.broadcast %52 : vector<1x32xf32> to vector<8x32xf32>
    %126 = arith.addf %124, %125 : vector<8x32xf32>
    %127 = arith.addf %105, %126 : vector<8x32xf32>
    %cst_51 = arith.constant dense<0.000000e+00> : vector<8xf32>
    %128 = vector.multi_reduction <add>, %127, %cst_51 [1] : vector<8x32xf32> to vector<8xf32>
    %129 = vector.shape_cast %128 : vector<8xf32> to vector<8x1xf32>
    %cst_52 = arith.constant 3.200000e+01 : f32
    %130 = vector.broadcast %cst_52 : f32 to vector<8x1xf32>
    %131 = arith.divf %129, %130 : vector<8x1xf32>
    %132 = vector.broadcast %131 : vector<8x1xf32> to vector<8x32xf32>
    %133 = arith.subf %127, %132 : vector<8x32xf32>
    %134 = arith.mulf %133, %133 : vector<8x32xf32>
    %cst_53 = arith.constant dense<0.000000e+00> : vector<8xf32>
    %135 = vector.multi_reduction <add>, %134, %cst_53 [1] : vector<8x32xf32> to vector<8xf32>
    %136 = vector.shape_cast %135 : vector<8xf32> to vector<8x1xf32>
    %cst_54 = arith.constant 3.200000e+01 : f32
    %137 = vector.broadcast %cst_54 : f32 to vector<8x1xf32>
    %138 = arith.divf %136, %137 : vector<8x1xf32>
    %139 = vector.broadcast %131 : vector<8x1xf32> to vector<8x32xf32>
    %140 = arith.subf %127, %139 : vector<8x32xf32>
    %cst_55 = arith.constant 9.99999996E-13 : f32
    %141 = vector.broadcast %cst_55 : f32 to vector<8x1xf32>
    %142 = arith.addf %138, %141 : vector<8x1xf32>
    %143 = math.rsqrt %142 : vector<8x1xf32>
    %144 = vector.broadcast %143 : vector<8x1xf32> to vector<8x32xf32>
    %145 = arith.mulf %140, %144 : vector<8x32xf32>
    %146 = vector.broadcast %53 : vector<1x32xf32> to vector<8x32xf32>
    %147 = arith.mulf %145, %146 : vector<8x32xf32>
    %148 = vector.broadcast %54 : vector<1x32xf32> to vector<8x32xf32>
    %149 = arith.addf %147, %148 : vector<8x32xf32>
    %c1 = arith.constant 1 : index
    %c0_56 = arith.constant 0 : index
    %c0_57 = arith.constant 0 : index
    %150 = vector.load %arg5[%c1, %c0_56, %c0_57] : memref<2x32x96xbf16, #tpu.memory_space<vmem>>, vector<1x32x96xbf16>
    %151 = vector.shape_cast %150 : vector<1x32x96xbf16> to vector<32x96xbf16>
    %c1_58 = arith.constant 1 : index
    %c0_59 = arith.constant 0 : index
    %152 = vector.load %arg3[%c1_58, %c0_59] : memref<2x352xf32, #tpu.memory_space<vmem>>, vector<1x96xf32>
    %c1_60 = arith.constant 1 : index
    %c0_61 = arith.constant 0 : index
    %c0_62 = arith.constant 0 : index
    %153 = vector.load %arg6[%c1_60, %c0_61, %c0_62] : memref<2x32x32xbf16, #tpu.memory_space<vmem>>, vector<1x32x32xbf16>
    %154 = vector.shape_cast %153 : vector<1x32x32xbf16> to vector<32x32xbf16>
    %c1_63 = arith.constant 1 : index
    %c96_64 = arith.constant 96 : index
    %155 = vector.load %arg3[%c1_63, %c96_64] : memref<2x352xf32, #tpu.memory_space<vmem>>, vector<1x32xf32>
    %c1_65 = arith.constant 1 : index
    %c128_66 = arith.constant 128 : index
    %156 = vector.load %arg3[%c1_65, %c128_66] : memref<2x352xf32, #tpu.memory_space<vmem>>, vector<1x32xf32>
    %c1_67 = arith.constant 1 : index
    %c160_68 = arith.constant 160 : index
    %157 = vector.load %arg3[%c1_67, %c160_68] : memref<2x352xf32, #tpu.memory_space<vmem>>, vector<1x32xf32>
    %c1_69 = arith.constant 1 : index
    %c0_70 = arith.constant 0 : index
    %c0_71 = arith.constant 0 : index
    %158 = vector.load %arg7[%c1_69, %c0_70, %c0_71] : memref<2x32x64xbf16, #tpu.memory_space<vmem>>, vector<1x32x64xbf16>
    %159 = vector.shape_cast %158 : vector<1x32x64xbf16> to vector<32x64xbf16>
    %c1_72 = arith.constant 1 : index
    %c192_73 = arith.constant 192 : index
    %160 = vector.load %arg3[%c1_72, %c192_73] : memref<2x352xf32, #tpu.memory_space<vmem>>, vector<1x64xf32>
    %c1_74 = arith.constant 1 : index
    %c0_75 = arith.constant 0 : index
    %c0_76 = arith.constant 0 : index
    %161 = vector.load %arg8[%c1_74, %c0_75, %c0_76] : memref<2x64x32xbf16, #tpu.memory_space<vmem>>, vector<1x64x32xbf16>
    %162 = vector.shape_cast %161 : vector<1x64x32xbf16> to vector<64x32xbf16>
    %c1_77 = arith.constant 1 : index
    %c256_78 = arith.constant 256 : index
    %163 = vector.load %arg3[%c1_77, %c256_78] : memref<2x352xf32, #tpu.memory_space<vmem>>, vector<1x32xf32>
    %c1_79 = arith.constant 1 : index
    %c288_80 = arith.constant 288 : index
    %164 = vector.load %arg3[%c1_79, %c288_80] : memref<2x352xf32, #tpu.memory_space<vmem>>, vector<1x32xf32>
    %c1_81 = arith.constant 1 : index
    %c320_82 = arith.constant 320 : index
    %165 = vector.load %arg3[%c1_81, %c320_82] : memref<2x352xf32, #tpu.memory_space<vmem>>, vector<1x32xf32>
    %166 = arith.truncf %149 : vector<8x32xf32> to vector<8x32xbf16>
    %cst_83 = arith.constant dense<0.000000e+00> : vector<8x96xf32>
    %167 = tpu.matmul %166, %151, %cst_83 {dimension_numbers = #tpu.dot_dimension_numbers<[1], [0], [0], [1], [0, 0, 1, 1], [], []>} : vector<8x32xbf16>, vector<32x96xbf16>, vector<8x96xf32> -> vector<8x96xf32>
    %168 = vector.broadcast %152 : vector<1x96xf32> to vector<8x96xf32>
    %169 = arith.addf %167, %168 : vector<8x96xf32>
    %170 = arith.truncf %169 : vector<8x96xf32> to vector<8x96xbf16>
    %171 = vector.extract_strided_slice %170 {offsets = [0, 0], sizes = [8, 32], strides = [1, 1]} : vector<8x96xbf16> to vector<8x32xbf16>
    %172 = vector.extract_strided_slice %170 {offsets = [0, 32], sizes = [8, 32], strides = [1, 1]} : vector<8x96xbf16> to vector<8x32xbf16>
    %173 = vector.extract_strided_slice %170 {offsets = [0, 64], sizes = [8, 32], strides = [1, 1]} : vector<8x96xbf16> to vector<8x32xbf16>
    %cst_84 = arith.constant dense<0.000000e+00> : vector<8x8xf32>
    %174 = tpu.matmul %171, %172, %cst_84 {dimension_numbers = #tpu.dot_dimension_numbers<[1], [1], [0], [0], [0, 0, 1, 0], [], []>} : vector<8x32xbf16>, vector<8x32xbf16>, vector<8x8xf32> -> vector<8x8xf32>
    %cst_85 = arith.constant 0.176776692 : f32
    %175 = vector.broadcast %cst_85 : f32 to vector<8x8xf32>
    %176 = arith.mulf %174, %175 : vector<8x8xf32>
    %177 = arith.addf %176, %38 : vector<8x8xf32>
    %cst_86 = arith.constant dense<0xFF800000> : vector<8xf32>
    %178 = vector.multi_reduction <maximumf>, %177, %cst_86 [1] : vector<8x8xf32> to vector<8xf32>
    %179 = vector.shape_cast %178 : vector<8xf32> to vector<8x1xf32>
    %180 = vector.broadcast %179 : vector<8x1xf32> to vector<8x8xf32>
    %181 = arith.subf %177, %180 : vector<8x8xf32>
    %182 = math.exp %181 : vector<8x8xf32>
    %cst_87 = arith.constant dense<0.000000e+00> : vector<8xf32>
    %183 = vector.multi_reduction <add>, %182, %cst_87 [1] : vector<8x8xf32> to vector<8xf32>
    %184 = vector.shape_cast %183 : vector<8xf32> to vector<8x1xf32>
    %185 = tpu.reciprocal %184 {approx = true} : vector<8x1xf32> -> vector<8x1xf32>
    %186 = vector.broadcast %185 : vector<8x1xf32> to vector<8x8xf32>
    %187 = arith.mulf %182, %186 : vector<8x8xf32>
    %188 = arith.truncf %187 : vector<8x8xf32> to vector<8x8xbf16>
    %cst_88 = arith.constant dense<0.000000e+00> : vector<8x32xf32>
    %189 = tpu.matmul %188, %173, %cst_88 {dimension_numbers = #tpu.dot_dimension_numbers<[1], [0], [0], [1], [0, 0, 1, 1], [], []>} : vector<8x8xbf16>, vector<8x32xbf16>, vector<8x32xf32> -> vector<8x32xf32>
    %190 = arith.truncf %189 : vector<8x32xf32> to vector<8x32xbf16>
    %cst_89 = arith.constant dense<0.000000e+00> : vector<8x32xf32>
    %191 = tpu.matmul %190, %154, %cst_89 {dimension_numbers = #tpu.dot_dimension_numbers<[1], [0], [0], [1], [0, 0, 1, 1], [], []>} : vector<8x32xbf16>, vector<32x32xbf16>, vector<8x32xf32> -> vector<8x32xf32>
    %192 = vector.broadcast %155 : vector<1x32xf32> to vector<8x32xf32>
    %193 = arith.addf %191, %192 : vector<8x32xf32>
    %194 = arith.addf %149, %193 : vector<8x32xf32>
    %cst_90 = arith.constant dense<0.000000e+00> : vector<8xf32>
    %195 = vector.multi_reduction <add>, %194, %cst_90 [1] : vector<8x32xf32> to vector<8xf32>
    %196 = vector.shape_cast %195 : vector<8xf32> to vector<8x1xf32>
    %cst_91 = arith.constant 3.200000e+01 : f32
    %197 = vector.broadcast %cst_91 : f32 to vector<8x1xf32>
    %198 = arith.divf %196, %197 : vector<8x1xf32>
    %199 = vector.broadcast %198 : vector<8x1xf32> to vector<8x32xf32>
    %200 = arith.subf %194, %199 : vector<8x32xf32>
    %201 = arith.mulf %200, %200 : vector<8x32xf32>
    %cst_92 = arith.constant dense<0.000000e+00> : vector<8xf32>
    %202 = vector.multi_reduction <add>, %201, %cst_92 [1] : vector<8x32xf32> to vector<8xf32>
    %203 = vector.shape_cast %202 : vector<8xf32> to vector<8x1xf32>
    %cst_93 = arith.constant 3.200000e+01 : f32
    %204 = vector.broadcast %cst_93 : f32 to vector<8x1xf32>
    %205 = arith.divf %203, %204 : vector<8x1xf32>
    %206 = vector.broadcast %198 : vector<8x1xf32> to vector<8x32xf32>
    %207 = arith.subf %194, %206 : vector<8x32xf32>
    %cst_94 = arith.constant 9.99999996E-13 : f32
    %208 = vector.broadcast %cst_94 : f32 to vector<8x1xf32>
    %209 = arith.addf %205, %208 : vector<8x1xf32>
    %210 = math.rsqrt %209 : vector<8x1xf32>
    %211 = vector.broadcast %210 : vector<8x1xf32> to vector<8x32xf32>
    %212 = arith.mulf %207, %211 : vector<8x32xf32>
    %213 = vector.broadcast %156 : vector<1x32xf32> to vector<8x32xf32>
    %214 = arith.mulf %212, %213 : vector<8x32xf32>
    %215 = vector.broadcast %157 : vector<1x32xf32> to vector<8x32xf32>
    %216 = arith.addf %214, %215 : vector<8x32xf32>
    %217 = arith.truncf %216 : vector<8x32xf32> to vector<8x32xbf16>
    %cst_95 = arith.constant dense<0.000000e+00> : vector<8x64xf32>
    %218 = tpu.matmul %217, %159, %cst_95 {dimension_numbers = #tpu.dot_dimension_numbers<[1], [0], [0], [1], [0, 0, 1, 1], [], []>} : vector<8x32xbf16>, vector<32x64xbf16>, vector<8x64xf32> -> vector<8x64xf32>
    %219 = vector.broadcast %160 : vector<1x64xf32> to vector<8x64xf32>
    %220 = arith.addf %218, %219 : vector<8x64xf32>
    %cst_96 = arith.constant 5.000000e-01 : f32
    %221 = vector.broadcast %cst_96 : f32 to vector<8x64xf32>
    %222 = arith.mulf %221, %220 : vector<8x64xf32>
    %cst_97 = arith.constant 4.471500e-02 : f32
    %223 = vector.broadcast %cst_97 : f32 to vector<8x64xf32>
    %224 = arith.mulf %223, %220 : vector<8x64xf32>
    %225 = arith.mulf %224, %220 : vector<8x64xf32>
    %226 = arith.mulf %225, %220 : vector<8x64xf32>
    %227 = arith.addf %220, %226 : vector<8x64xf32>
    %cst_98 = arith.constant 0.797884583 : f32
    %228 = vector.broadcast %cst_98 : f32 to vector<8x64xf32>
    %229 = arith.mulf %228, %227 : vector<8x64xf32>
    %230 = math.tanh %229 : vector<8x64xf32>
    %cst_99 = arith.constant 1.000000e+00 : f32
    %231 = vector.broadcast %cst_99 : f32 to vector<8x64xf32>
    %232 = arith.addf %231, %230 : vector<8x64xf32>
    %233 = arith.mulf %222, %232 : vector<8x64xf32>
    %234 = arith.truncf %233 : vector<8x64xf32> to vector<8x64xbf16>
    %cst_100 = arith.constant dense<0.000000e+00> : vector<8x32xf32>
    %235 = tpu.matmul %234, %162, %cst_100 {dimension_numbers = #tpu.dot_dimension_numbers<[1], [0], [0], [1], [0, 0, 1, 1], [], []>} : vector<8x64xbf16>, vector<64x32xbf16>, vector<8x32xf32> -> vector<8x32xf32>
    %236 = vector.broadcast %163 : vector<1x32xf32> to vector<8x32xf32>
    %237 = arith.addf %235, %236 : vector<8x32xf32>
    %238 = arith.addf %216, %237 : vector<8x32xf32>
    %cst_101 = arith.constant dense<0.000000e+00> : vector<8xf32>
    %239 = vector.multi_reduction <add>, %238, %cst_101 [1] : vector<8x32xf32> to vector<8xf32>
    %240 = vector.shape_cast %239 : vector<8xf32> to vector<8x1xf32>
    %cst_102 = arith.constant 3.200000e+01 : f32
    %241 = vector.broadcast %cst_102 : f32 to vector<8x1xf32>
    %242 = arith.divf %240, %241 : vector<8x1xf32>
    %243 = vector.broadcast %242 : vector<8x1xf32> to vector<8x32xf32>
    %244 = arith.subf %238, %243 : vector<8x32xf32>
    %245 = arith.mulf %244, %244 : vector<8x32xf32>
    %cst_103 = arith.constant dense<0.000000e+00> : vector<8xf32>
    %246 = vector.multi_reduction <add>, %245, %cst_103 [1] : vector<8x32xf32> to vector<8xf32>
    %247 = vector.shape_cast %246 : vector<8xf32> to vector<8x1xf32>
    %cst_104 = arith.constant 3.200000e+01 : f32
    %248 = vector.broadcast %cst_104 : f32 to vector<8x1xf32>
    %249 = arith.divf %247, %248 : vector<8x1xf32>
    %250 = vector.broadcast %242 : vector<8x1xf32> to vector<8x32xf32>
    %251 = arith.subf %238, %250 : vector<8x32xf32>
    %cst_105 = arith.constant 9.99999996E-13 : f32
    %252 = vector.broadcast %cst_105 : f32 to vector<8x1xf32>
    %253 = arith.addf %249, %252 : vector<8x1xf32>
    %254 = math.rsqrt %253 : vector<8x1xf32>
    %255 = vector.broadcast %254 : vector<8x1xf32> to vector<8x32xf32>
    %256 = arith.mulf %251, %255 : vector<8x32xf32>
    %257 = vector.broadcast %164 : vector<1x32xf32> to vector<8x32xf32>
    %258 = arith.mulf %256, %257 : vector<8x32xf32>
    %259 = vector.broadcast %165 : vector<1x32xf32> to vector<8x32xf32>
    %260 = arith.addf %258, %259 : vector<8x32xf32>
    %261 = vector.extract_strided_slice %260 {offsets = [0, 0], sizes = [1, 32], strides = [1, 1]} : vector<8x32xf32> to vector<1x32xf32>
    %c0_106 = arith.constant 0 : index
    %c0_107 = arith.constant 0 : index
    %262 = vector.load %arg9[%c0_106, %c0_107] : memref<32x33xbf16, #tpu.memory_space<vmem>>, vector<32x32xbf16>
    %c0_108 = arith.constant 0 : index
    %c64 = arith.constant 64 : index
    %263 = vector.load %arg4[%c0_108, %c64] : memref<1x97xf32, #tpu.memory_space<vmem>>, vector<1x32xf32>
    %c0_109 = arith.constant 0 : index
    %c32_110 = arith.constant 32 : index
    %264 = vector.load %arg9[%c0_109, %c32_110] : memref<32x33xbf16, #tpu.memory_space<vmem>>, vector<32x1xbf16>
    %c0_111 = arith.constant 0 : index
    %c96_112 = arith.constant 96 : index
    %265 = vector.load %arg4[%c0_111, %c96_112] : memref<1x97xf32, #tpu.memory_space<vmem>>, vector<1x1xf32>
    %266 = arith.truncf %261 : vector<1x32xf32> to vector<1x32xbf16>
    %cst_113 = arith.constant dense<0.000000e+00> : vector<1x32xf32>
    %267 = tpu.matmul %266, %262, %cst_113 {dimension_numbers = #tpu.dot_dimension_numbers<[1], [0], [0], [1], [0, 0, 1, 1], [], []>} : vector<1x32xbf16>, vector<32x32xbf16>, vector<1x32xf32> -> vector<1x32xf32>
    %268 = arith.addf %267, %263 : vector<1x32xf32>
    %269 = math.tanh %268 : vector<1x32xf32>
    %270 = arith.truncf %269 : vector<1x32xf32> to vector<1x32xbf16>
    %cst_114 = arith.constant dense<0.000000e+00> : vector<1x1xf32>
    %271 = tpu.matmul %270, %264, %cst_114 {dimension_numbers = #tpu.dot_dimension_numbers<[1], [0], [0], [1], [0, 0, 1, 1], [], []>} : vector<1x32xbf16>, vector<32x1xbf16>, vector<1x1xf32> -> vector<1x1xf32>
    %272 = arith.addf %271, %265 : vector<1x1xf32>
    %c0_115 = arith.constant 0 : index
    %c0_116 = arith.constant 0 : index
    %c0_117 = arith.constant 0 : index
    %273 = vector.load %arg10[%c0_115, %c0_116, %c0_117] : memref<1x1x1xf32, #tpu.memory_space<vmem>>, vector<1x1x1xf32>
    %274 = vector.shape_cast %273 : vector<1x1x1xf32> to vector<1x1xf32>
    %275 = vector.shape_cast %272 : vector<1x1xf32> to vector<1x1x1xf32>
    tpu.vector_store %arg10[%c0_115, %c0_116, %c0_117], %275 {strides = array<i32>} : memref<1x1x1xf32, #tpu.memory_space<vmem>>, vector<1x1x1xf32>,
    return
  }
  func.func @transform_0(%arg0: i32, %arg1: memref<2xi32, #tpu.memory_space<smem>>) -> (i32, i32) {
    %c0_i32 = arith.constant 0 : i32
    %c0_i32_0 = arith.constant 0 : i32
    return %arg0, %c0_i32 : i32, i32
  }
  func.func @transform_1(%arg0: i32, %arg1: memref<2xi32, #tpu.memory_space<smem>>) -> (i32, i32) {
    %c0_i32 = arith.constant 0 : i32
    %c0_i32_0 = arith.constant 0 : i32
    %c0_i32_1 = arith.constant 0 : i32
    return %c0_i32, %c0_i32_0 : i32, i32
  }
  func.func @transform_2(%arg0: i32, %arg1: memref<2xi32, #tpu.memory_space<smem>>) -> (i32, i32) {
    %c0_i32 = arith.constant 0 : i32
    %c0_i32_0 = arith.constant 0 : i32
    %c0_i32_1 = arith.constant 0 : i32
    return %c0_i32, %c0_i32_0 : i32, i32
  }
  func.func @transform_3(%arg0: i32, %arg1: memref<2xi32, #tpu.memory_space<smem>>) -> (i32, i32, i32) {
    %c0_i32 = arith.constant 0 : i32
    %c0_i32_0 = arith.constant 0 : i32
    %c0_i32_1 = arith.constant 0 : i32
    %c0_i32_2 = arith.constant 0 : i32
    return %c0_i32, %c0_i32_0, %c0_i32_1 : i32, i32, i32
  }
  func.func @transform_4(%arg0: i32, %arg1: memref<2xi32, #tpu.memory_space<smem>>) -> (i32, i32, i32) {
    %c0_i32 = arith.constant 0 : i32
    %c0_i32_0 = arith.constant 0 : i32
    %c0_i32_1 = arith.constant 0 : i32
    %c0_i32_2 = arith.constant 0 : i32
    return %c0_i32, %c0_i32_0, %c0_i32_1 : i32, i32, i32
  }
  func.func @transform_5(%arg0: i32, %arg1: memref<2xi32, #tpu.memory_space<smem>>) -> (i32, i32, i32) {
    %c0_i32 = arith.constant 0 : i32
    %c0_i32_0 = arith.constant 0 : i32
    %c0_i32_1 = arith.constant 0 : i32
    %c0_i32_2 = arith.constant 0 : i32
    return %c0_i32, %c0_i32_0, %c0_i32_1 : i32, i32, i32
  }
  func.func @transform_6(%arg0: i32, %arg1: memref<2xi32, #tpu.memory_space<smem>>) -> (i32, i32, i32) {
    %c0_i32 = arith.constant 0 : i32
    %c0_i32_0 = arith.constant 0 : i32
    %c0_i32_1 = arith.constant 0 : i32
    %c0_i32_2 = arith.constant 0 : i32
    return %c0_i32, %c0_i32_0, %c0_i32_1 : i32, i32, i32
  }
  func.func @transform_7(%arg0: i32, %arg1: memref<2xi32, #tpu.memory_space<smem>>) -> (i32, i32) {
    %c0_i32 = arith.constant 0 : i32
    %c0_i32_0 = arith.constant 0 : i32
    %c0_i32_1 = arith.constant 0 : i32
    return %c0_i32, %c0_i32_0 : i32, i32
  }
  func.func @transform_8(%arg0: i32, %arg1: memref<2xi32, #tpu.memory_space<smem>>) -> (i32, i32, i32) {
    %c0_i32 = arith.constant 0 : i32
    %c0_i32_0 = arith.constant 0 : i32
    %c0_i32_1 = arith.constant 0 : i32
    return %arg0, %c0_i32, %c0_i32_0 : i32, i32, i32
  }
}

</mosaic_0001>

<llo_original>
// kernel: tpu_custom_call.1
$region0: #{tpu_custom_call.1}
  #allocation0 [shape = 'u32[]', space=smem, size = 0x4, offset = 0x4, fixed_abs, tag = 'smem constant byte address 0x4 - core index']
  #allocation1 [shape = 'u32[144,128]{1,0:T(1,128)}', space=vmem, size = 0x12000, scoped, tag = 'internal scratch']
  #allocation2 [shape = 's32[1]{0}', space=sflag, size = 0x4, scoped, tag = 'scoped memory for tpu_custom_call.1']
  #allocation3 [shape = 'u8[512]{0}', space=smem, size = 0x200, scoped, tag = 'prefetched SMEM operand 0']
  %s0 = inlined_call_operand.hbm [shape: s32[2], index: 0, kind: input, shape index: {}]
  %s1 = inlined_call_operand.hbm [shape: f32[16,32], index: 1, kind: input, shape index: {}]
  %s2 = inlined_call_operand.hbm [shape: f32[2,352], index: 2, kind: input, shape index: {}]
  %s3 = inlined_call_operand.vmem [shape: f32[1,97], index: 3, kind: input, shape index: {}]
  %s4 = inlined_call_operand.vmem [shape: bf16[2,32,96], index: 4, kind: input, shape index: {}]
  %s5 = inlined_call_operand.vmem [shape: bf16[2,32,32], index: 5, kind: input, shape index: {}]
  %s6 = inlined_call_operand.vmem [shape: bf16[2,32,64], index: 6, kind: input, shape index: {}]
  %s7 = inlined_call_operand.vmem [shape: bf16[2,64,32], index: 7, kind: input, shape index: {}]
  %s8 = inlined_call_operand.vmem [shape: bf16[32,33], index: 8, kind: input, shape index: {}]
  %s9 = inlined_call_operand.vmem [shape: f32[2,1,1], index: 9, kind: output, shape index: {}]
  %s10 = sld [smem:[#allocation0]]
  $region73: #{tpu_custom_call.1} parent=0
    _
  %s12 = ssub.s32 1, %s10
  %s13 = scalar_select 0, %s12, %s10
  %15 = dma.hbm_to_smem %s0, 16, [#allocation3], [#allocation2]
  %16 = dma.done [#allocation2], 16
  %17 = sfence
  $region1: #{tpu_custom_call.1} parent=0
    #allocation4 [shape = 'u8[8192]{0}', space=vmem, size = 0x2000, scoped, tag = 'input window, operand 1']
    #allocation5 [shape = 's32[2]{0}', space=sflag, size = 0x8, scoped, tag = 'scoped memory for tpu_custom_call.1']
    #allocation6 [shape = 'u8[3072]{0}', space=vmem, size = 0xc00, scoped, tag = 'input window, operand 2, single buffered']
    #allocation7 [shape = 's32[1]{0}', space=sflag, size = 0x4, scoped, tag = 'scoped memory for tpu_custom_call.1']
    %18 = vsyncpa [#allocation5], 0
    %s19 = scalar_lea.sflag [#allocation5], 1
    %20 = vsyncpa %s19, 0
    %21 = vsyncpa [#allocation7], 0
    loop: start=0, step=1, limit=4
    $region2: #{tpu_custom_call.1} parent=1 // loop_pre_header
      _
    $region3: #{tpu_custom_call.1} parent=1 // loop_header
      %s23 = sphi 0, %s27
      %p24 = scmp.ge.s32.totalorder %s23, 4
      %s33 = sphi 0, %s35
      %s36 = sphi 0, %s33
      %s37 = sphi 0, %s36
      %s53 = sphi 0, %s37
      %s57 = sphi 0, %s57
      %s59 = sphi 0, %s57
      %s60 = sphi 0, %s59
      %s74 = sphi 0, %s60
      %s78 = sphi 0, %s78
      %s80 = sphi 0, %s78
      %s81 = sphi 0, %s80
      %s95 = sphi 0, %s81
      %s99 = sphi 0, %s99
      %s101 = sphi 0, %s99
      %s102 = sphi 0, %s101
      %s116 = sphi 0, %s102
      %s120 = sphi 0, %s120
      %s122 = sphi 0, %s120
      %s123 = sphi 0, %s122
      %s137 = sphi 0, %s123
      %s141 = sphi 0, %s141
      %s143 = sphi 0, %s141
      %s144 = sphi 0, %s143
      %s158 = sphi 0, %s144
      %s162 = sphi 0, %s162
      %s164 = sphi 0, %s162
      %s165 = sphi 0, %s164
      %s179 = sphi 0, %s165
      %s183 = sphi 0, %s183
      %s185 = sphi 0, %s183
      %s186 = sphi 0, %s185
      %s200 = sphi 0, %s186
      %s206 = sphi 0, %s208
      %s209 = sphi 0, %s206
      %s210 = sphi 0, %s209
      %s226 = sphi 0, %s210
    $region4: #{tpu_custom_call.1} parent=1 // loop_header_branch
      %26 = sbr.rel (%p24) target = $region8
    $region5: #{tpu_custom_call.1} parent=1 // loop_body
      %s28 = ssub.s32 %s23, 1
      %s29 = ssub.s32 %s23, 2
      %s30 = sadd.s32 %s23, 1
      %s31 = ssub.s32 %s23, %s30
      %p32 = scmp.eq.s32.totalorder %s31, 0
      %s34 = sadd.s32 %s33, 1
      %s35 = scalar_select %p32, %s33, %s34
      %p38 = pneg %p32
      %p39 = scmp.eq.s32.totalorder %s23, 1
      %p40 = por %p38, %p39
      %p41 = scmp.ne.s32.totalorder %s33, %s36
      %p42 = scmp.eq.s32.totalorder %s23, 0
      %p43 = por %p41, %p42
      %p44 = scmp.ne.s32.totalorder %s33, %s36
      %p45 = scmp.eq.s32.totalorder %s28, 1
      %p46 = por %p44, %p45
      %p47 = scmp.ne.s32.totalorder %s36, %s37
      %p48 = scmp.eq.s32.totalorder %s28, 0
      %p49 = por %p47, %p48
      %p50 = scmp.ne.s32.totalorder %s36, %s37
      %p51 = scmp.eq.s32.totalorder %s29, 1
      %p52 = por %p50, %p51
      %p54 = scmp.ne.s32.totalorder %s37, %s53
      %p55 = scmp.eq.s32.totalorder %s29, 0
      %p56 = por %p54, %p55
      %s58 = sadd.s32 %s57, 1
      %p61 = scmp.eq.s32.totalorder %s23, 1
      %p62 = scmp.ne.s32.totalorder %s57, %s59
      %p63 = scmp.eq.s32.totalorder %s23, 0
      %p64 = por %p62, %p63
      %p65 = scmp.ne.s32.totalorder %s57, %s59
      %p66 = scmp.eq.s32.totalorder %s28, 1
      %p67 = por %p65, %p66
      %p68 = scmp.ne.s32.totalorder %s59, %s60
      %p69 = scmp.eq.s32.totalorder %s28, 0
      %p70 = por %p68, %p69
      %p71 = scmp.ne.s32.totalorder %s59, %s60
      %p72 = scmp.eq.s32.totalorder %s29, 1
      %p73 = por %p71, %p72
      %p75 = scmp.ne.s32.totalorder %s60, %s74
      %p76 = scmp.eq.s32.totalorder %s29, 0
      %p77 = por %p75, %p76
      %s79 = sadd.s32 %s78, 1
      %p82 = scmp.eq.s32.totalorder %s23, 1
      %p83 = scmp.ne.s32.totalorder %s78, %s80
      %p84 = scmp.eq.s32.totalorder %s23, 0
      %p85 = por %p83, %p84
      %p86 = scmp.ne.s32.totalorder %s78, %s80
      %p87 = scmp.eq.s32.totalorder %s28, 1
      %p88 = por %p86, %p87
      %p89 = scmp.ne.s32.totalorder %s80, %s81
      %p90 = scmp.eq.s32.totalorder %s28, 0
      %p91 = por %p89, %p90
      %p92 = scmp.ne.s32.totalorder %s80, %s81
      %p93 = scmp.eq.s32.totalorder %s29, 1
      %p94 = por %p92, %p93
      %p96 = scmp.ne.s32.totalorder %s81, %s95
      %p97 = scmp.eq.s32.totalorder %s29, 0
      %p98 = por %p96, %p97
      %s100 = sadd.s32 %s99, 1
      %p103 = scmp.eq.s32.totalorder %s23, 1
      %p104 = scmp.ne.s32.totalorder %s99, %s101
      %p105 = scmp.eq.s32.totalorder %s23, 0
      %p106 = por %p104, %p105
      %p107 = scmp.ne.s32.totalorder %s99, %s101
      %p108 = scmp.eq.s32.totalorder %s28, 1
      %p109 = por %p107, %p108
      %p110 = scmp.ne.s32.totalorder %s101, %s102
      %p111 = scmp.eq.s32.totalorder %s28, 0
      %p112 = por %p110, %p111
      %p113 = scmp.ne.s32.totalorder %s101, %s102
      %p114 = scmp.eq.s32.totalorder %s29, 1
      %p115 = por %p113, %p114
      %p117 = scmp.ne.s32.totalorder %s102, %s116
      %p118 = scmp.eq.s32.totalorder %s29, 0
      %p119 = por %p117, %p118
      %s121 = sadd.s32 %s120, 1
      %p124 = scmp.eq.s32.totalorder %s23, 1
      %p125 = scmp.ne.s32.totalorder %s120, %s122
      %p126 = scmp.eq.s32.totalorder %s23, 0
      %p127 = por %p125, %p126
      %p128 = scmp.ne.s32.totalorder %s120, %s122
      %p129 = scmp.eq.s32.totalorder %s28, 1
      %p130 = por %p128, %p129
      %p131 = scmp.ne.s32.totalorder %s122, %s123
      %p132 = scmp.eq.s32.totalorder %s28, 0
      %p133 = por %p131, %p132
      %p134 = scmp.ne.s32.totalorder %s122, %s123
      %p135 = scmp.eq.s32.totalorder %s29, 1
      %p136 = por %p134, %p135
      %p138 = scmp.ne.s32.totalorder %s123, %s137
      %p139 = scmp.eq.s32.totalorder %s29, 0
      %p140 = por %p138, %p139
      %s142 = sadd.s32 %s141, 1
      %p145 = scmp.eq.s32.totalorder %s23, 1
      %p146 = scmp.ne.s32.totalorder %s141, %s143
      %p147 = scmp.eq.s32.totalorder %s23, 0
      %p148 = por %p146, %p147
      %p149 = scmp.ne.s32.totalorder %s141, %s143
      %p150 = scmp.eq.s32.totalorder %s28, 1
      %p151 = por %p149, %p150
      %p152 = scmp.ne.s32.totalorder %s143, %s144
      %p153 = scmp.eq.s32.totalorder %s28, 0
      %p154 = por %p152, %p153
      %p155 = scmp.ne.s32.totalorder %s143, %s144
      %p156 = scmp.eq.s32.totalorder %s29, 1
      %p157 = por %p155, %p156
      %p159 = scmp.ne.s32.totalorder %s144, %s158
      %p160 = scmp.eq.s32.totalorder %s29, 0
      %p161 = por %p159, %p160
      %s163 = sadd.s32 %s162, 1
      %p166 = scmp.eq.s32.totalorder %s23, 1
      %p167 = scmp.ne.s32.totalorder %s162, %s164
      %p168 = scmp.eq.s32.totalorder %s23, 0
      %p169 = por %p167, %p168
      %p170 = scmp.ne.s32.totalorder %s162, %s164
      %p171 = scmp.eq.s32.totalorder %s28, 1
      %p172 = por %p170, %p171
      %p173 = scmp.ne.s32.totalorder %s164, %s165
      %p174 = scmp.eq.s32.totalorder %s28, 0
      %p175 = por %p173, %p174
      %p176 = scmp.ne.s32.totalorder %s164, %s165
      %p177 = scmp.eq.s32.totalorder %s29, 1
      %p178 = por %p176, %p177
      %p180 = scmp.ne.s32.totalorder %s165, %s179
      %p181 = scmp.eq.s32.totalorder %s29, 0
      %p182 = por %p180, %p181
      %s184 = sadd.s32 %s183, 1
      %p187 = scmp.eq.s32.totalorder %s23, 1
      %p188 = scmp.ne.s32.totalorder %s183, %s185
      %p189 = scmp.eq.s32.totalorder %s23, 0
      %p190 = por %p188, %p189
      %p191 = scmp.ne.s32.totalorder %s183, %s185
      %p192 = scmp.eq.s32.totalorder %s28, 1
      %p193 = por %p191, %p192
      %p194 = scmp.ne.s32.totalorder %s185, %s186
      %p195 = scmp.eq.s32.totalorder %s28, 0
      %p196 = por %p194, %p195
      %p197 = scmp.ne.s32.totalorder %s185, %s186
      %p198 = scmp.eq.s32.totalorder %s29, 1
      %p199 = por %p197, %p198
      %p201 = scmp.ne.s32.totalorder %s186, %s200
      %p202 = scmp.eq.s32.totalorder %s29, 0
      %p203 = por %p201, %p202
      %s204 = ssub.s32 %s23, %s30
      %p205 = scmp.eq.s32.totalorder %s204, 0
      %s207 = sadd.s32 %s206, 1
      %s208 = scalar_select %p205, %s206, %s207
      %p211 = pneg %p205
      %p212 = scmp.eq.s32.totalorder %s23, 1
      %p213 = por %p211, %p212
      %p214 = scmp.ne.s32.totalorder %s206, %s209
      %p215 = scmp.eq.s32.totalorder %s23, 0
      %p216 = por %p214, %p215
      %p217 = scmp.ne.s32.totalorder %s206, %s209
      %p218 = scmp.eq.s32.totalorder %s28, 1
      %p219 = por %p217, %p218
      %p220 = scmp.ne.s32.totalorder %s209, %s210
      %p221 = scmp.eq.s32.totalorder %s28, 0
      %p222 = por %p220, %p221
      %p223 = scmp.ne.s32.totalorder %s209, %s210
      %p224 = scmp.eq.s32.totalorder %s29, 1
      %p225 = por %p223, %p224
      %p227 = scmp.ne.s32.totalorder %s210, %s226
      %p228 = scmp.eq.s32.totalorder %s29, 0
      %p229 = por %p227, %p228
      %p230 = scmp.le.s32.totalorder 1, %s23
      %p231 = scmp.lt.s32.totalorder %s23, 3
      %p232 = pnand %p230, %p231
      %p233 = pneg %p232
      // Predicated region
      $region9: #{tpu_custom_call.1} parent=5 // pred_check
        _
      $region10: #{tpu_custom_call.1} parent=5 // pred_check_branch
        %235 = sbr.rel (%p232) target = $region12
      $region11: #{tpu_custom_call.1} parent=5 // pred_region
        %s236 = ssub.s32 %s23, 1
        // Predicated region
        $region13: #{tpu_custom_call.1} parent=11 // pred_check
          %p237 = pneg %p70
        $region14: #{tpu_custom_call.1} parent=11 // pred_check_branch
          %239 = sbr.rel (%p237) target = $region16
        $region15: #{tpu_custom_call.1} parent=11 // pred_region
          %s241 = ssub.s32 96, 96
          %242 = vsyncadd [#allocation7], %s241
          %s244 = sshll.u32 [#allocation6], 4
          %s245 = int_to_ptr.vmem [resolvable:$true] %s244
          %247 = dma.hbm_to_vmem [thread:$0]  %s2, 96, %s245, [#allocation7]
        $region16: #{tpu_custom_call.1} parent=11 // pred_fallthru
          _
        // Predicated region
        $region17: #{tpu_custom_call.1} parent=11 // pred_check
          %p248 = pneg %p91
        $region18: #{tpu_custom_call.1} parent=11 // pred_check_branch
          %250 = sbr.rel (%p248) target = $region20
        $region19: #{tpu_custom_call.1} parent=11 // pred_region
          _
        $region20: #{tpu_custom_call.1} parent=11 // pred_fallthru
          _
        // Predicated region
        $region21: #{tpu_custom_call.1} parent=11 // pred_check
          %p251 = pneg %p112
        $region22: #{tpu_custom_call.1} parent=11 // pred_check_branch
          %253 = sbr.rel (%p251) target = $region24
        $region23: #{tpu_custom_call.1} parent=11 // pred_region
          _
        $region24: #{tpu_custom_call.1} parent=11 // pred_fallthru
          _
        // Predicated region
        $region25: #{tpu_custom_call.1} parent=11 // pred_check
          %p254 = pneg %p133
        $region26: #{tpu_custom_call.1} parent=11 // pred_check_branch
          %256 = sbr.rel (%p254) target = $region28
        $region27: #{tpu_custom_call.1} parent=11 // pred_region
          _
        $region28: #{tpu_custom_call.1} parent=11 // pred_fallthru
          _
        // Predicated region
        $region29: #{tpu_custom_call.1} parent=11 // pred_check
          %p257 = pneg %p154
        $region30: #{tpu_custom_call.1} parent=11 // pred_check_branch
          %259 = sbr.rel (%p257) target = $region32
        $region31: #{tpu_custom_call.1} parent=11 // pred_region
          _
        $region32: #{tpu_custom_call.1} parent=11 // pred_fallthru
          _
        // Predicated region
        $region33: #{tpu_custom_call.1} parent=11 // pred_check
          %p260 = pneg %p175
        $region34: #{tpu_custom_call.1} parent=11 // pred_check_branch
          %262 = sbr.rel (%p260) target = $region36
        $region35: #{tpu_custom_call.1} parent=11 // pred_region
          _
        $region36: #{tpu_custom_call.1} parent=11 // pred_fallthru
          _
        // Predicated region
        $region37: #{tpu_custom_call.1} parent=11 // pred_check
          %p263 = pneg %p196
        $region38: #{tpu_custom_call.1} parent=11 // pred_check_branch
          %265 = sbr.rel (%p263) target = $region40
        $region39: #{tpu_custom_call.1} parent=11 // pred_region
          _
        $region40: #{tpu_custom_call.1} parent=11 // pred_fallthru
          _
      $region12: #{tpu_custom_call.1} parent=5 // pred_fallthru
        _
      %p266 = scmp.lt.s32.totalorder %s23, 2
      // Predicated region
      $region41: #{tpu_custom_call.1} parent=5 // pred_check
        %p267 = pneg %p266
      $region42: #{tpu_custom_call.1} parent=5 // pred_check_branch
        %269 = sbr.rel (%p267) target = $region44
      $region43: #{tpu_custom_call.1} parent=5 // pred_region
        // Predicated region
        $region45: #{tpu_custom_call.1} parent=43 // pred_check
          %p270 = pneg %p43
        $region46: #{tpu_custom_call.1} parent=43 // pred_check_branch
          %272 = sbr.rel (%p270) target = $region48
        $region47: #{tpu_custom_call.1} parent=43 // pred_region
          %s273 = sand.u32 %s33, 1
          %s274 = scalar_lea.sflag [#allocation5], %s273
          %s275 = sand.u32 %s33, 1
          %s276 = smul.addr %s275, 8
          %s277 = scalar_lea.vmem [#allocation4], %s276
          %s279 = ssub.s32 128, 128
          %280 = vsyncadd %s274, %s279
          %s281 = smul.addr %s23, 128
          %s282 = scalar_lea.hbm %s1, %s281
          %s284 = sshll.u32 %s277, 4
          %s285 = int_to_ptr.vmem [resolvable:$true] %s284
          %287 = dma.hbm_to_vmem [thread:$0]  %s282, 128, %s285, %s274
        $region48: #{tpu_custom_call.1} parent=43 // pred_fallthru
          _
      $region44: #{tpu_custom_call.1} parent=5 // pred_fallthru
        _
      %p288 = scmp.le.s32.totalorder 1, %s23
      %p289 = scmp.lt.s32.totalorder %s23, 3
      %p290 = pnand %p288, %p289
      %p291 = pneg %p290
      // Predicated region
      $region49: #{tpu_custom_call.1} parent=5 // pred_check
        _
      $region50: #{tpu_custom_call.1} parent=5 // pred_check_branch
        %293 = sbr.rel (%p290) target = $region52
      $region51: #{tpu_custom_call.1} parent=5 // pred_region
        %s294 = ssub.s32 %s23, 1
        %s295 = sand.u32 %s36, 1
        %s296 = scalar_lea.sflag [#allocation5], %s295
        %s297 = sand.u32 %s36, 1
        %s298 = smul.addr %s297, 8
        %s299 = scalar_lea.vmem [#allocation4], %s298
        // Predicated region
        $region53: #{tpu_custom_call.1} parent=51 // pred_check
          %p300 = pneg %p49
        $region54: #{tpu_custom_call.1} parent=51 // pred_check_branch
          %302 = sbr.rel (%p300) target = $region56
        $region55: #{tpu_custom_call.1} parent=51 // pred_region
          %303 = dma.done %s296, 128
        $region56: #{tpu_custom_call.1} parent=51 // pred_fallthru
          _
        // Predicated region
        $region57: #{tpu_custom_call.1} parent=51 // pred_check
          %p304 = pneg %p70
        $region58: #{tpu_custom_call.1} parent=51 // pred_check_branch
          %306 = sbr.rel (%p304) target = $region60
        $region59: #{tpu_custom_call.1} parent=51 // pred_region
          %307 = dma.done [#allocation7], 96
        $region60: #{tpu_custom_call.1} parent=51 // pred_fallthru
          _
        %s308 = sand.u32 %s36, 1
        %s309 = scalar_lea.sflag [#allocation5], %s308
        %s310 = sand.u32 %s36, 1
        %s311 = smul.addr %s310, 8
        %s312 = scalar_lea.vmem [#allocation4], %s311
        %p313 = pneg %p49
        %p314 = pneg %p46
        %p315 = pneg %p70
        %p316 = pneg %p67
        %p317 = pneg %p91
        %p318 = pneg %p88
        %p319 = pneg %p112
        %p320 = pneg %p109
        %p321 = pneg %p133
        %p322 = pneg %p130
        %p323 = pneg %p154
        %p324 = pneg %p151
        %p325 = pneg %p175
        %p326 = pneg %p172
        %p327 = pneg %p196
        %p328 = pneg %p193
        %p329 = pneg %p222
        %p330 = pneg %p219
        %p331 = scmp.lt.s32.totalorder %s28, 1
        %s332 = scalar_select %p331, %s28, 1
        %s333 = scalar_lea.vmem %s9, %s332
        %p334 = scmp.lt.s32.totalorder %s28, 1
        %s335 = scalar_select %p334, %s28, 1
        %s336 = scalar_lea.vmem %s9, %s335
        %v338 = vld [vmem:[%s299] sm:$0xff]
        %v339 = vld [vmem:[%s3] sm:$0x1]
        %vm340 = vcmask 261120
        %v341 = vsel %vm340, %v338, 0.0
        %342 = vadd.xlane.f32.xlu0 %v341
        %v343 = vpop.xlane.xlu0 %342
        %v344 = vrcp.pop 32.0
        %v345 = vmul.f32 %v343, %v344
        %v346 = vsub.f32 %v338, %v345
        %v347 = vmul.f32 %v346, %v346
        %v348 = vsel %vm340, %v347, 0.0
        %349 = vadd.xlane.f32.xlu0 %v348
        %v350 = vpop.xlane.xlu0 %349
        %v351 = vmul.f32 %v350, %v344
        %v352 = vadd.f32 %v351, 1e-12
        %v353 = vrsqrt.pop %v352
        %v354 = vmul.f32 %v346, %v353
        %v356 = vlaneseq
        %v357 = vshrl.u32 %v356, 7
        %v358 = vsub.s32 0, %v357
        %v359 = vrot.slane %v339, %v358
        %v361 = vmul.f32 %v354, %v359
        %362 = vrot.lane.b32.xlu0 %v359, 96
        %v363 = vpop.permute.xlu0 %362
        %v365 = vadd.f32 %v361, %v363
        %v366 = vlaneseq
        %v367 = vand.u32 %v366, 127
        %s368 = sld [smem:[#allocation3 + %s28]]
        %vm369 = vcmp.ge.s32.totalorder %v367, 0
        %v370 = vstv %s368
        %vm371 = vcmp.lt.s32.totalorder %v367, %v370
        %vm372 = vmand %vm369, %vm371
        %v373 = vsel %vm372, 0.0, -1e+09
        %v374 = vld [vmem:[%s4] sm:$0xf]
        %v375 = vld [vmem:[%s4 + $0x4] sm:$0xf]
        %v376 = vld [vmem:[%s4 + $0x8] sm:$0xf]
        %v377 = vld [vmem:[%s4 + $0xc] sm:$0xf]
        %v378 = vld [vmem:[#allocation6] sm:$0x1]
        %v379 = vld [vmem:[%s5] sm:$0xf]
        %v380 = vld [vmem:[%s5 + $0x4] sm:$0xf]
        %v381 = vld [vmem:[%s5 + $0x8] sm:$0xf]
        %v382 = vld [vmem:[%s5 + $0xc] sm:$0xf]
        %v383 = vld [vmem:[#allocation6 + $0x2] sm:$0x1]
        %v384 = vld [vmem:[%s6] sm:$0xf]
        %v385 = vld [vmem:[%s6 + $0x4] sm:$0xf]
        %v386 = vld [vmem:[%s6 + $0x8] sm:$0xf]
        %v387 = vld [vmem:[%s6 + $0xc] sm:$0xf]
        %v388 = vld [vmem:[%s7] sm:$0xf]
        %v389 = vld [vmem:[%s7 + $0x4] sm:$0xf]
        %v390 = vld [vmem:[%s7 + $0x8] sm:$0xf]
        %v391 = vld [vmem:[%s7 + $0xc] sm:$0xf]
        %v392 = vld [vmem:[%s7 + $0x10] sm:$0xf]
        %v393 = vld [vmem:[%s7 + $0x14] sm:$0xf]
        %v394 = vld [vmem:[%s7 + $0x18] sm:$0xf]
        %v395 = vld [vmem:[%s7 + $0x1c] sm:$0xf]
        %v396 = vld [vmem:[#allocation6 + $0x4] sm:$0x1]
        %v397 = vpack.c.bf16 %v365, %v365
        %v398 = vlaneseq
        %v399 = vshrl.u32 %v398, 7
        %v400 = vsub.s32 0, %v399
        %v401 = vrot.slane %v378, %v400
        %v406 = vunpack.c.l.b16 %v374
        %v407 = vunpack.c.l.b16 %v375
        %v408 = vunpack.c.l.b16 %v376
        %v409 = vunpack.c.l.b16 %v377
        %v410 = vpack.c.b16 %v407, %v406
        %v411 = vpack.c.b16 %v409, %v408
        %v415 = vsel %vm340, %v397, 0
        %417 = vmatprep.subr.bf16.mxu0 0
        %418 = vmatpush1.bf16.msra.mxu0 %v410
        %419 = vmatprep.subr.bf16.mxu0 0
        %420 = vmatpush1.bf16.msra.mxu0 %v411
        %421 = vmatprep.subr.bf16.mxu0 0
        %422 = vmatpush1.bf16.msra.mxu0 0
        %423 = vmatprep.subr.bf16.mxu0 0
        %424 = vmatpush1.bf16.msra.mxu0 0
        %425 = vmatprep.subr.bf16.mxu0 0
        %426 = vmatpush1.bf16.msra.mxu0 0
        %427 = vmatprep.subr.bf16.mxu0 0
        %428 = vmatpush1.bf16.msra.mxu0 0
        %429 = vmatprep.subr.bf16.mxu0 0
        %430 = vmatpush1.bf16.msra.mxu0 0
        %431 = vmatprep.subr.bf16.mxu0 0
        %432 = vmatpush1.bf16.msra.mxu0 0
        %433 = vmatprep.subr.bf16.mxu0 0
        %434 = vmatpush1.bf16.msra.mxu0 0
        %435 = vmatprep.subr.bf16.mxu0 0
        %436 = vmatpush1.bf16.msra.mxu0 0
        %437 = vmatprep.subr.bf16.mxu0 0
        %438 = vmatpush1.bf16.msra.mxu0 0
        %439 = vmatprep.subr.bf16.mxu0 0
        %440 = vmatpush1.bf16.msra.mxu0 0
        %441 = vmatprep.subr.bf16.mxu0 0
        %442 = vmatpush1.bf16.msra.mxu0 0
        %443 = vmatprep.subr.bf16.mxu0 0
        %444 = vmatpush1.bf16.msra.mxu0 0
        %445 = vmatprep.subr.bf16.mxu0 0
        %446 = vmatpush1.bf16.msra.mxu0 0
        %447 = vmatprep.subr.bf16.mxu0 0
        %448 = vmatpush1.bf16.msra.mxu0 0
        %449 = vmatprep.mubr.bf16.mxu0 0
        %450 = vmatmul.mubr.bf16.gmra.mrb[0].mxu0 %v415
        %v451 = vpop.f32.mrb[0].mxu0
        %v452 = vadd.f32 %v401, %v451
        %v453 = vpop.f32.mrb[0].mxu0
        %v454 = vpop.f32.mrb[0].mxu0
        %v455 = vpop.f32.mrb[0].mxu0
        %456 = vdwg.mxu0
        %v457 = vpack.c.bf16 %v452, %v452
        %459 = vrot.lane.b32.xlu0 %v457, 96
        %v460 = vpop.permute.xlu0 %459
        %v462 = vsel %vm340, %v457, 0
        %v465 = vsel %vm340, %v460, 0
        %467 = vmatprep.subr.bf16.mxu0 0
        %468 = vmatpush1.bf16.xpose.msra.mxu0 %v465
        %469 = vmatprep.subr.bf16.mxu0 0
        %470 = vmatpush1.bf16.xpose.msra.mxu0 0
        %471 = vmatprep.subr.bf16.mxu0 0
        %472 = vmatpush1.bf16.xpose.msra.mxu0 0
        %473 = vmatprep.subr.bf16.mxu0 0
        %474 = vmatpush1.bf16.xpose.msra.mxu0 0
        %475 = vmatprep.subr.bf16.mxu0 0
        %476 = vmatpush1.bf16.xpose.msra.mxu0 0
        %477 = vmatprep.subr.bf16.mxu0 0
        %478 = vmatpush1.bf16.xpose.msra.mxu0 0
        %479 = vmatprep.subr.bf16.mxu0 0
        %480 = vmatpush1.bf16.xpose.msra.mxu0 0
        %481 = vmatprep.subr.bf16.mxu0 0
        %482 = vmatpush1.bf16.xpose.msra.mxu0 0
        %483 = vmatprep.subr.bf16.mxu0 0
        %484 = vmatpush1.bf16.xpose.msra.mxu0 0
        %485 = vmatprep.subr.bf16.mxu0 0
        %486 = vmatpush1.bf16.xpose.msra.mxu0 0
        %487 = vmatprep.subr.bf16.mxu0 0
        %488 = vmatpush1.bf16.xpose.msra.mxu0 0
        %489 = vmatprep.subr.bf16.mxu0 0
        %490 = vmatpush1.bf16.xpose.msra.mxu0 0
        %491 = vmatprep.subr.bf16.mxu0 0
        %492 = vmatpush1.bf16.xpose.msra.mxu0 0
        %493 = vmatprep.subr.bf16.mxu0 0
        %494 = vmatpush1.bf16.xpose.msra.mxu0 0
        %495 = vmatprep.subr.bf16.mxu0 0
        %496 = vmatpush1.bf16.xpose.msra.mxu0 0
        %497 = vmatprep.subr.bf16.mxu0 0
        %498 = vmatpush1.bf16.xpose.msra.mxu0 0
        %499 = vmatprep.mubr.bf16.mxu0 0
        %500 = vmatmul.mubr.bf16.gmra.mrb[0].mxu0 %v462
        %v501 = vpop.f32.mrb[0].mxu0
        %v502 = vadd.f32 0.0, %v501
        %v503 = vpop.f32.mrb[0].mxu0
        %v504 = vpop.f32.mrb[0].mxu0
        %v505 = vpop.f32.mrb[0].mxu0
        %506 = vdwg.mxu0
        %v507 = vmul.f32 %v502, 0.17677669
        %v508 = vadd.f32 %v507, %v373
        %vm509 = vcmask 64512
        %v510 = vsel %vm509, %v508, -inf
        %511 = vmax.xlane.f32.xlu0 %v510
        %v512 = vpop.xlane.xlu0 %511
        %v513 = vsub.f32 %v508, %v512
        %v514 = vmul.f32 %v513, 1.442695
        %v515 = vpow.pop %v514
        %v516 = vsel %vm509, %v515, 0.0
        %517 = vadd.xlane.f32.xlu0 %v516
        %v518 = vpop.xlane.xlu0 %517
        %v519 = vrcp.pop %v518
        %v520 = vmul.f32 %v515, %v519
        %v521 = vpack.c.bf16 %v520, %v520
        %522 = vrot.lane.b32.xlu0 %v457, 64
        %v523 = vpop.permute.xlu0 %522
        %v525 = vsel %vm509, %v521, 0
        %vm527 = vcmask 1043456
        %v529 = vsel %vm527, %v523, 0
        %531 = vmatprep.subr.bf16.mxu0 0
        %532 = vmatpush1.bf16.msra.mxu0 %v529
        %533 = vmatprep.subr.bf16.mxu0 0
        %534 = vmatpush1.bf16.msra.mxu0 0
        %535 = vmatprep.subr.bf16.mxu0 0
        %536 = vmatpush1.bf16.msra.mxu0 0
        %537 = vmatprep.subr.bf16.mxu0 0
        %538 = vmatpush1.bf16.msra.mxu0 0
        %539 = vmatprep.subr.bf16.mxu0 0
        %540 = vmatpush1.bf16.msra.mxu0 0
        %541 = vmatprep.subr.bf16.mxu0 0
        %542 = vmatpush1.bf16.msra.mxu0 0
        %543 = vmatprep.subr.bf16.mxu0 0
        %544 = vmatpush1.bf16.msra.mxu0 0
        %545 = vmatprep.subr.bf16.mxu0 0
        %546 = vmatpush1.bf16.msra.mxu0 0
        %547 = vmatprep.subr.bf16.mxu0 0
        %548 = vmatpush1.bf16.msra.mxu0 0
        %549 = vmatprep.subr.bf16.mxu0 0
        %550 = vmatpush1.bf16.msra.mxu0 0
        %551 = vmatprep.subr.bf16.mxu0 0
        %552 = vmatpush1.bf16.msra.mxu0 0
        %553 = vmatprep.subr.bf16.mxu0 0
        %554 = vmatpush1.bf16.msra.mxu0 0
        %555 = vmatprep.subr.bf16.mxu0 0
        %556 = vmatpush1.bf16.msra.mxu0 0
        %557 = vmatprep.subr.bf16.mxu0 0
        %558 = vmatpush1.bf16.msra.mxu0 0
        %559 = vmatprep.subr.bf16.mxu0 0
        %560 = vmatpush1.bf16.msra.mxu0 0
        %561 = vmatprep.subr.bf16.mxu0 0
        %562 = vmatpush1.bf16.msra.mxu0 0
        %563 = vmatprep.mubr.bf16.mxu0 0
        %564 = vmatmul.mubr.bf16.gmra.mrb[0].mxu0 %v525
        %v565 = vpop.f32.mrb[0].mxu0
        %v566 = vadd.f32 0.0, %v565
        %v567 = vpop.f32.mrb[0].mxu0
        %v568 = vpop.f32.mrb[0].mxu0
        %v569 = vpop.f32.mrb[0].mxu0
        %570 = vdwg.mxu0
        %v571 = vpack.c.bf16 %v566, %v566
        %v576 = vunpack.c.l.b16 %v379
        %v577 = vunpack.c.l.b16 %v380
        %v578 = vunpack.c.l.b16 %v381
        %v579 = vunpack.c.l.b16 %v382
        %v580 = vpack.c.b16 %v577, %v576
        %v581 = vpack.c.b16 %v579, %v578
        %585 = vrot.lane.b32.xlu0 %v401, 32
        %v586 = vpop.permute.xlu0 %585
        %v589 = vsel %vm340, %v571, 0
        %591 = vmatprep.subr.bf16.mxu0 0
        %592 = vmatpush1.bf16.msra.mxu0 %v580
        %593 = vmatprep.subr.bf16.mxu0 0
        %594 = vmatpush1.bf16.msra.mxu0 %v581
        %595 = vmatprep.subr.bf16.mxu0 0
        %596 = vmatpush1.bf16.msra.mxu0 0
        %597 = vmatprep.subr.bf16.mxu0 0
        %598 = vmatpush1.bf16.msra.mxu0 0
        %599 = vmatprep.subr.bf16.mxu0 0
        %600 = vmatpush1.bf16.msra.mxu0 0
        %601 = vmatprep.subr.bf16.mxu0 0
        %602 = vmatpush1.bf16.msra.mxu0 0
        %603 = vmatprep.subr.bf16.mxu0 0
        %604 = vmatpush1.bf16.msra.mxu0 0
        %605 = vmatprep.subr.bf16.mxu0 0
        %606 = vmatpush1.bf16.msra.mxu0 0
        %607 = vmatprep.subr.bf16.mxu0 0
        %608 = vmatpush1.bf16.msra.mxu0 0
        %609 = vmatprep.subr.bf16.mxu0 0
        %610 = vmatpush1.bf16.msra.mxu0 0
        %611 = vmatprep.subr.bf16.mxu0 0
        %612 = vmatpush1.bf16.msra.mxu0 0
        %613 = vmatprep.subr.bf16.mxu0 0
        %614 = vmatpush1.bf16.msra.mxu0 0
        %615 = vmatprep.subr.bf16.mxu0 0
        %616 = vmatpush1.bf16.msra.mxu0 0
        %617 = vmatprep.subr.bf16.mxu0 0
        %618 = vmatpush1.bf16.msra.mxu0 0
        %619 = vmatprep.subr.bf16.mxu0 0
        %620 = vmatpush1.bf16.msra.mxu0 0
        %621 = vmatprep.subr.bf16.mxu0 0
        %622 = vmatpush1.bf16.msra.mxu0 0
        %623 = vmatprep.mubr.bf16.mxu0 0
        %624 = vmatmul.mubr.bf16.gmra.mrb[0].mxu0 %v589
        %v625 = vpop.f32.mrb[0].mxu0
        %v626 = vadd.f32 %v586, %v625
        %v627 = vpop.f32.mrb[0].mxu0
        %v628 = vpop.f32.mrb[0].mxu0
        %v629 = vpop.f32.mrb[0].mxu0
        %630 = vdwg.mxu0
        %v631 = vadd.f32 %v365, %v626
        %v632 = vsel %vm340, %v631, 0.0
        %633 = vadd.xlane.f32.xlu0 %v632
        %v634 = vpop.xlane.xlu0 %633
        %v635 = vmul.f32 %v634, %v344
        %v636 = vsub.f32 %v631, %v635
        %v637 = vmul.f32 %v636, %v636
        %v638 = vsel %vm340, %v637, 0.0
        %639 = vadd.xlane.f32.xlu0 %v638
        %v640 = vpop.xlane.xlu0 %639
        %v641 = vmul.f32 %v640, %v344
        %v642 = vadd.f32 %v641, 1e-12
        %v643 = vrsqrt.pop %v642
        %v644 = vmul.f32 %v636, %v643
        %v645 = vlaneseq
        %v646 = vshrl.u32 %v645, 7
        %v647 = vsub.s32 0, %v646
        %v648 = vrot.slane %v383, %v647
        %v649 = vmul.f32 %v644, %v648
        %651 = vrot.lane.b32.xlu0 %v648, 96
        %v652 = vpop.permute.xlu0 %651
        %v654 = vadd.f32 %v649, %v652
        %v655 = vpack.c.bf16 %v654, %v654
        %v660 = vunpack.c.l.b16 %v384
        %v661 = vunpack.c.l.b16 %v385
        %v662 = vunpack.c.l.b16 %v386
        %v663 = vunpack.c.l.b16 %v387
        %v664 = vpack.c.b16 %v661, %v660
        %v665 = vpack.c.b16 %v663, %v662
        %668 = vrot.lane.b32.xlu0 %v648, 64
        %v669 = vpop.permute.xlu0 %668
        %v672 = vsel %vm340, %v655, 0
        %674 = vmatprep.subr.bf16.mxu0 0
        %675 = vmatpush1.bf16.msra.mxu0 %v664
        %676 = vmatprep.subr.bf16.mxu0 0
        %677 = vmatpush1.bf16.msra.mxu0 %v665
        %678 = vmatprep.subr.bf16.mxu0 0
        %679 = vmatpush1.bf16.msra.mxu0 0
        %680 = vmatprep.subr.bf16.mxu0 0
        %681 = vmatpush1.bf16.msra.mxu0 0
        %682 = vmatprep.subr.bf16.mxu0 0
        %683 = vmatpush1.bf16.msra.mxu0 0
        %684 = vmatprep.subr.bf16.mxu0 0
        %685 = vmatpush1.bf16.msra.mxu0 0
        %686 = vmatprep.subr.bf16.mxu0 0
        %687 = vmatpush1.bf16.msra.mxu0 0
        %688 = vmatprep.subr.bf16.mxu0 0
        %689 = vmatpush1.bf16.msra.mxu0 0
        %690 = vmatprep.subr.bf16.mxu0 0
        %691 = vmatpush1.bf16.msra.mxu0 0
        %692 = vmatprep.subr.bf16.mxu0 0
        %693 = vmatpush1.bf16.msra.mxu0 0
        %694 = vmatprep.subr.bf16.mxu0 0
        %695 = vmatpush1.bf16.msra.mxu0 0
        %696 = vmatprep.subr.bf16.mxu0 0
        %697 = vmatpush1.bf16.msra.mxu0 0
        %698 = vmatprep.subr.bf16.mxu0 0
        %699 = vmatpush1.bf16.msra.mxu0 0
        %700 = vmatprep.subr.bf16.mxu0 0
        %701 = vmatpush1.bf16.msra.mxu0 0
        %702 = vmatprep.subr.bf16.mxu0 0
        %703 = vmatpush1.bf16.msra.mxu0 0
        %704 = vmatprep.subr.bf16.mxu0 0
        %705 = vmatpush1.bf16.msra.mxu0 0
        %706 = vmatprep.mubr.bf16.mxu0 0
        %707 = vmatmul.mubr.bf16.gmra.mrb[0].mxu0 %v672
        %v708 = vpop.f32.mrb[0].mxu0
        %v709 = vadd.f32 %v669, %v708
        %v710 = vpop.f32.mrb[0].mxu0
        %v711 = vpop.f32.mrb[0].mxu0
        %v712 = vpop.f32.mrb[0].mxu0
        %713 = vdwg.mxu0
        %v714 = vmul.f32 %v709, 0.5
        %v715 = vmul.f32 %v709, 0.044715
        %v716 = vmul.f32 %v715, %v709
        %v717 = vmul.f32 %v716, %v709
        %v718 = vadd.f32 %v709, %v717
        %v719 = vmul.f32 %v718, 0.7978846
        %v720 = vtanh.pop %v719
        %v721 = vadd.f32 %v720, 1.0
        %v722 = vmul.f32 %v714, %v721
        %v723 = vpack.c.bf16 %v722, %v722
        %v724 = vlaneseq
        %v725 = vshrl.u32 %v724, 7
        %v726 = vsub.s32 0, %v725
        %v727 = vrot.slane %v396, %v726
        %v736 = vunpack.c.l.b16 %v388
        %v737 = vunpack.c.l.b16 %v389
        %v738 = vunpack.c.l.b16 %v390
        %v739 = vunpack.c.l.b16 %v391
        %v740 = vunpack.c.l.b16 %v392
        %v741 = vunpack.c.l.b16 %v393
        %v742 = vunpack.c.l.b16 %v394
        %v743 = vunpack.c.l.b16 %v395
        %v744 = vpack.c.b16 %v737, %v736
        %v745 = vpack.c.b16 %v739, %v738
        %v746 = vpack.c.b16 %v741, %v740
        %v747 = vpack.c.b16 %v743, %v742
        %vm752 = vcmask 523264
        %v754 = vsel %vm752, %v723, 0
        %756 = vmatprep.subr.bf16.mxu0 0
        %757 = vmatpush1.bf16.msra.mxu0 %v744
        %758 = vmatprep.subr.bf16.mxu0 0
        %759 = vmatpush1.bf16.msra.mxu0 %v745
        %760 = vmatprep.subr.bf16.mxu0 0
        %761 = vmatpush1.bf16.msra.mxu0 %v746
        %762 = vmatprep.subr.bf16.mxu0 0
        %763 = vmatpush1.bf16.msra.mxu0 %v747
        %764 = vmatprep.subr.bf16.mxu0 0
        %765 = vmatpush1.bf16.msra.mxu0 0
        %766 = vmatprep.subr.bf16.mxu0 0
        %767 = vmatpush1.bf16.msra.mxu0 0
        %768 = vmatprep.subr.bf16.mxu0 0
        %769 = vmatpush1.bf16.msra.mxu0 0
        %770 = vmatprep.subr.bf16.mxu0 0
        %771 = vmatpush1.bf16.msra.mxu0 0
        %772 = vmatprep.subr.bf16.mxu0 0
        %773 = vmatpush1.bf16.msra.mxu0 0
        %774 = vmatprep.subr.bf16.mxu0 0
        %775 = vmatpush1.bf16.msra.mxu0 0
        %776 = vmatprep.subr.bf16.mxu0 0
        %777 = vmatpush1.bf16.msra.mxu0 0
        %778 = vmatprep.subr.bf16.mxu0 0
        %779 = vmatpush1.bf16.msra.mxu0 0
        %780 = vmatprep.subr.bf16.mxu0 0
        %781 = vmatpush1.bf16.msra.mxu0 0
        %782 = vmatprep.subr.bf16.mxu0 0
        %783 = vmatpush1.bf16.msra.mxu0 0
        %784 = vmatprep.subr.bf16.mxu0 0
        %785 = vmatpush1.bf16.msra.mxu0 0
        %786 = vmatprep.subr.bf16.mxu0 0
        %787 = vmatpush1.bf16.msra.mxu0 0
        %788 = vmatprep.mubr.bf16.mxu0 0
        %789 = vmatmul.mubr.bf16.gmra.mrb[0].mxu0 %v754
        %v790 = vpop.f32.mrb[0].mxu0
        %v791 = vadd.f32 %v727, %v790
        %v792 = vpop.f32.mrb[0].mxu0
        %v793 = vpop.f32.mrb[0].mxu0
        %v794 = vpop.f32.mrb[0].mxu0
        %795 = vdwg.mxu0
        %v796 = vadd.f32 %v654, %v791
        %v797 = vsel %vm340, %v796, 0.0
        %798 = vadd.xlane.f32.xlu0 %v797
        %v799 = vpop.xlane.xlu0 %798
        %v800 = vmul.f32 %v799, %v344
        %v801 = vsub.f32 %v796, %v800
        %v802 = vmul.f32 %v801, %v801
        %v803 = vsel %vm340, %v802, 0.0
        %804 = vadd.xlane.f32.xlu0 %v803
        %v805 = vpop.xlane.xlu0 %804
        %v806 = vmul.f32 %v805, %v344
        %v807 = vadd.f32 %v806, 1e-12
        %v808 = vrsqrt.pop %v807
        %v809 = vmul.f32 %v801, %v808
        %811 = vrot.lane.b32.xlu0 %v727, 96
        %v812 = vpop.permute.xlu0 %811
        %v814 = vmul.f32 %v809, %v812
        %815 = vrot.lane.b32.xlu0 %v727, 64
        %v816 = vpop.permute.xlu0 %815
        %v818 = vadd.f32 %v814, %v816
        %s819 = scalar_lea.vmem %s4, 16
        %v820 = vld [vmem:[%s819] sm:$0xf]
        %v821 = vld [vmem:[%s819 + $0x4] sm:$0xf]
        %v822 = vld [vmem:[%s819 + $0x8] sm:$0xf]
        %v823 = vld [vmem:[%s819 + $0xc] sm:$0xf]
        %v824 = vld [vmem:[#allocation6 + $0x1] sm:$0x1]
        %s825 = scalar_lea.vmem %s5, 16
        %v826 = vld [vmem:[%s825] sm:$0xf]
        %v827 = vld [vmem:[%s825 + $0x4] sm:$0xf]
        %v828 = vld [vmem:[%s825 + $0x8] sm:$0xf]
        %v829 = vld [vmem:[%s825 + $0xc] sm:$0xf]
        %v830 = vld [vmem:[#allocation6 + $0x3] sm:$0x1]
        %s831 = scalar_lea.vmem %s6, 16
        %v832 = vld [vmem:[%s831] sm:$0xf]
        %v833 = vld [vmem:[%s831 + $0x4] sm:$0xf]
        %v834 = vld [vmem:[%s831 + $0x8] sm:$0xf]
        %v835 = vld [vmem:[%s831 + $0xc] sm:$0xf]
        %s836 = scalar_lea.vmem %s7, 32
        %v837 = vld [vmem:[%s836] sm:$0xf]
        %v838 = vld [vmem:[%s836 + $0x4] sm:$0xf]
        %v839 = vld [vmem:[%s836 + $0x8] sm:$0xf]
        %v840 = vld [vmem:[%s836 + $0xc] sm:$0xf]
        %v841 = vld [vmem:[%s836 + $0x10] sm:$0xf]
        %v842 = vld [vmem:[%s836 + $0x14] sm:$0xf]
        %v843 = vld [vmem:[%s836 + $0x18] sm:$0xf]
        %v844 = vld [vmem:[%s836 + $0x1c] sm:$0xf]
        %v845 = vld [vmem:[#allocation6 + $0x5] sm:$0x1]
        %v846 = vpack.c.bf16 %v818, %v818
        %v847 = vlaneseq
        %v848 = vshrl.u32 %v847, 7
        %v849 = vsub.s32 0, %v848
        %v850 = vrot.slane %v824, %v849
        %v855 = vunpack.c.l.b16 %v820
        %v856 = vunpack.c.l.b16 %v821
        %v857 = vunpack.c.l.b16 %v822
        %v858 = vunpack.c.l.b16 %v823
        %v859 = vpack.c.b16 %v856, %v855
        %v860 = vpack.c.b16 %v858, %v857
        %v864 = vsel %vm340, %v846, 0
        %866 = vmatprep.subr.bf16.mxu0 0
        %867 = vmatpush1.bf16.msra.mxu0 %v859
        %868 = vmatprep.subr.bf16.mxu0 0
        %869 = vmatpush1.bf16.msra.mxu0 %v860
        %870 = vmatprep.subr.bf16.mxu0 0
        %871 = vmatpush1.bf16.msra.mxu0 0
        %872 = vmatprep.subr.bf16.mxu0 0
        %873 = vmatpush1.bf16.msra.mxu0 0
        %874 = vmatprep.subr.bf16.mxu0 0
        %875 = vmatpush1.bf16.msra.mxu0 0
        %876 = vmatprep.subr.bf16.mxu0 0
        %877 = vmatpush1.bf16.msra.mxu0 0
        %878 = vmatprep.subr.bf16.mxu0 0
        %879 = vmatpush1.bf16.msra.mxu0 0
        %880 = vmatprep.subr.bf16.mxu0 0
        %881 = vmatpush1.bf16.msra.mxu0 0
        %882 = vmatprep.subr.bf16.mxu0 0
        %883 = vmatpush1.bf16.msra.mxu0 0
        %884 = vmatprep.subr.bf16.mxu0 0
        %885 = vmatpush1.bf16.msra.mxu0 0
        %886 = vmatprep.subr.bf16.mxu0 0
        %887 = vmatpush1.bf16.msra.mxu0 0
        %888 = vmatprep.subr.bf16.mxu0 0
        %889 = vmatpush1.bf16.msra.mxu0 0
        %890 = vmatprep.subr.bf16.mxu0 0
        %891 = vmatpush1.bf16.msra.mxu0 0
        %892 = vmatprep.subr.bf16.mxu0 0
        %893 = vmatpush1.bf16.msra.mxu0 0
        %894 = vmatprep.subr.bf16.mxu0 0
        %895 = vmatpush1.bf16.msra.mxu0 0
        %896 = vmatprep.subr.bf16.mxu0 0
        %897 = vmatpush1.bf16.msra.mxu0 0
        %898 = vmatprep.mubr.bf16.mxu0 0
        %899 = vmatmul.mubr.bf16.gmra.mrb[0].mxu0 %v864
        %v900 = vpop.f32.mrb[0].mxu0
        %v901 = vadd.f32 %v850, %v900
        %v902 = vpop.f32.mrb[0].mxu0
        %v903 = vpop.f32.mrb[0].mxu0
        %v904 = vpop.f32.mrb[0].mxu0
        %905 = vdwg.mxu0
        %v906 = vpack.c.bf16 %v901, %v901
        %908 = vrot.lane.b32.xlu0 %v906, 96
        %v909 = vpop.permute.xlu0 %908
        %v911 = vsel %vm340, %v906, 0
        %v914 = vsel %vm340, %v909, 0
        %916 = vmatprep.subr.bf16.mxu0 0
        %917 = vmatpush1.bf16.xpose.msra.mxu0 %v914
        %918 = vmatprep.subr.bf16.mxu0 0
        %919 = vmatpush1.bf16.xpose.msra.mxu0 0
        %920 = vmatprep.subr.bf16.mxu0 0
        %921 = vmatpush1.bf16.xpose.msra.mxu0 0
        %922 = vmatprep.subr.bf16.mxu0 0
        %923 = vmatpush1.bf16.xpose.msra.mxu0 0
        %924 = vmatprep.subr.bf16.mxu0 0
        %925 = vmatpush1.bf16.xpose.msra.mxu0 0
        %926 = vmatprep.subr.bf16.mxu0 0
        %927 = vmatpush1.bf16.xpose.msra.mxu0 0
        %928 = vmatprep.subr.bf16.mxu0 0
        %929 = vmatpush1.bf16.xpose.msra.mxu0 0
        %930 = vmatprep.subr.bf16.mxu0 0
        %931 = vmatpush1.bf16.xpose.msra.mxu0 0
        %932 = vmatprep.subr.bf16.mxu0 0
        %933 = vmatpush1.bf16.xpose.msra.mxu0 0
        %934 = vmatprep.subr.bf16.mxu0 0
        %935 = vmatpush1.bf16.xpose.msra.mxu0 0
        %936 = vmatprep.subr.bf16.mxu0 0
        %937 = vmatpush1.bf16.xpose.msra.mxu0 0
        %938 = vmatprep.subr.bf16.mxu0 0
        %939 = vmatpush1.bf16.xpose.msra.mxu0 0
        %940 = vmatprep.subr.bf16.mxu0 0
        %941 = vmatpush1.bf16.xpose.msra.mxu0 0
        %942 = vmatprep.subr.bf16.mxu0 0
        %943 = vmatpush1.bf16.xpose.msra.mxu0 0
        %944 = vmatprep.subr.bf16.mxu0 0
        %945 = vmatpush1.bf16.xpose.msra.mxu0 0
        %946 = vmatprep.subr.bf16.mxu0 0
        %947 = vmatpush1.bf16.xpose.msra.mxu0 0
        %948 = vmatprep.mubr.bf16.mxu0 0
        %949 = vmatmul.mubr.bf16.gmra.mrb[0].mxu0 %v911
        %v950 = vpop.f32.mrb[0].mxu0
        %v951 = vadd.f32 0.0, %v950
        %v952 = vpop.f32.mrb[0].mxu0
        %v953 = vpop.f32.mrb[0].mxu0
        %v954 = vpop.f32.mrb[0].mxu0
        %955 = vdwg.mxu0
        %v956 = vmul.f32 %v951, 0.17677669
        %v957 = vadd.f32 %v956, %v373
        %v958 = vsel %vm509, %v957, -inf
        %959 = vmax.xlane.f32.xlu0 %v958
        %v960 = vpop.xlane.xlu0 %959
        %v961 = vsub.f32 %v957, %v960
        %v962 = vmul.f32 %v961, 1.442695
        %v963 = vpow.pop %v962
        %v964 = vsel %vm509, %v963, 0.0
        %965 = vadd.xlane.f32.xlu0 %v964
        %v966 = vpop.xlane.xlu0 %965
        %v967 = vrcp.pop %v966
        %v968 = vmul.f32 %v963, %v967
        %v969 = vpack.c.bf16 %v968, %v968
        %970 = vrot.lane.b32.xlu0 %v906, 64
        %v971 = vpop.permute.xlu0 %970
        %v973 = vsel %vm509, %v969, 0
        %v976 = vsel %vm527, %v971, 0
        %978 = vmatprep.subr.bf16.mxu0 0
        %979 = vmatpush1.bf16.msra.mxu0 %v976
        %980 = vmatprep.subr.bf16.mxu0 0
        %981 = vmatpush1.bf16.msra.mxu0 0
        %982 = vmatprep.subr.bf16.mxu0 0
        %983 = vmatpush1.bf16.msra.mxu0 0
        %984 = vmatprep.subr.bf16.mxu0 0
        %985 = vmatpush1.bf16.msra.mxu0 0
        %986 = vmatprep.subr.bf16.mxu0 0
        %987 = vmatpush1.bf16.msra.mxu0 0
        %988 = vmatprep.subr.bf16.mxu0 0
        %989 = vmatpush1.bf16.msra.mxu0 0
        %990 = vmatprep.subr.bf16.mxu0 0
        %991 = vmatpush1.bf16.msra.mxu0 0
        %992 = vmatprep.subr.bf16.mxu0 0
        %993 = vmatpush1.bf16.msra.mxu0 0
        %994 = vmatprep.subr.bf16.mxu0 0
        %995 = vmatpush1.bf16.msra.mxu0 0
        %996 = vmatprep.subr.bf16.mxu0 0
        %997 = vmatpush1.bf16.msra.mxu0 0
        %998 = vmatprep.subr.bf16.mxu0 0
        %999 = vmatpush1.bf16.msra.mxu0 0
        %1000 = vmatprep.subr.bf16.mxu0 0
        %1001 = vmatpush1.bf16.msra.mxu0 0
        %1002 = vmatprep.subr.bf16.mxu0 0
        %1003 = vmatpush1.bf16.msra.mxu0 0
        %1004 = vmatprep.subr.bf16.mxu0 0
        %1005 = vmatpush1.bf16.msra.mxu0 0
        %1006 = vmatprep.subr.bf16.mxu0 0
        %1007 = vmatpush1.bf16.msra.mxu0 0
        %1008 = vmatprep.subr.bf16.mxu0 0
        %1009 = vmatpush1.bf16.msra.mxu0 0
        %1010 = vmatprep.mubr.bf16.mxu0 0
        %1011 = vmatmul.mubr.bf16.gmra.mrb[0].mxu0 %v973
        %v1012 = vpop.f32.mrb[0].mxu0
        %v1013 = vadd.f32 0.0, %v1012
        %v1014 = vpop.f32.mrb[0].mxu0
        %v1015 = vpop.f32.mrb[0].mxu0
        %v1016 = vpop.f32.mrb[0].mxu0
        %1017 = vdwg.mxu0
        %v1018 = vpack.c.bf16 %v1013, %v1013
        %v1023 = vunpack.c.l.b16 %v826
        %v1024 = vunpack.c.l.b16 %v827
        %v1025 = vunpack.c.l.b16 %v828
        %v1026 = vunpack.c.l.b16 %v829
        %v1027 = vpack.c.b16 %v1024, %v1023
        %v1028 = vpack.c.b16 %v1026, %v1025
        %1032 = vrot.lane.b32.xlu0 %v850, 32
        %v1033 = vpop.permute.xlu0 %1032
        %v1036 = vsel %vm340, %v1018, 0
        %1038 = vmatprep.subr.bf16.mxu0 0
        %1039 = vmatpush1.bf16.msra.mxu0 %v1027
        %1040 = vmatprep.subr.bf16.mxu0 0
        %1041 = vmatpush1.bf16.msra.mxu0 %v1028
        %1042 = vmatprep.subr.bf16.mxu0 0
        %1043 = vmatpush1.bf16.msra.mxu0 0
        %1044 = vmatprep.subr.bf16.mxu0 0
        %1045 = vmatpush1.bf16.msra.mxu0 0
        %1046 = vmatprep.subr.bf16.mxu0 0
        %1047 = vmatpush1.bf16.msra.mxu0 0
        %1048 = vmatprep.subr.bf16.mxu0 0
        %1049 = vmatpush1.bf16.msra.mxu0 0
        %1050 = vmatprep.subr.bf16.mxu0 0
        %1051 = vmatpush1.bf16.msra.mxu0 0
        %1052 = vmatprep.subr.bf16.mxu0 0
        %1053 = vmatpush1.bf16.msra.mxu0 0
        %1054 = vmatprep.subr.bf16.mxu0 0
        %1055 = vmatpush1.bf16.msra.mxu0 0
        %1056 = vmatprep.subr.bf16.mxu0 0
        %1057 = vmatpush1.bf16.msra.mxu0 0
        %1058 = vmatprep.subr.bf16.mxu0 0
        %1059 = vmatpush1.bf16.msra.mxu0 0
        %1060 = vmatprep.subr.bf16.mxu0 0
        %1061 = vmatpush1.bf16.msra.mxu0 0
        %1062 = vmatprep.subr.bf16.mxu0 0
        %1063 = vmatpush1.bf16.msra.mxu0 0
        %1064 = vmatprep.subr.bf16.mxu0 0
        %1065 = vmatpush1.bf16.msra.mxu0 0
        %1066 = vmatprep.subr.bf16.mxu0 0
        %1067 = vmatpush1.bf16.msra.mxu0 0
        %1068 = vmatprep.subr.bf16.mxu0 0
        %1069 = vmatpush1.bf16.msra.mxu0 0
        %1070 = vmatprep.mubr.bf16.mxu0 0
        %1071 = vmatmul.mubr.bf16.gmra.mrb[0].mxu0 %v1036
        %v1072 = vpop.f32.mrb[0].mxu0
        %v1073 = vadd.f32 %v1033, %v1072
        %v1074 = vpop.f32.mrb[0].mxu0
        %v1075 = vpop.f32.mrb[0].mxu0
        %v1076 = vpop.f32.mrb[0].mxu0
        %1077 = vdwg.mxu0
        %v1078 = vadd.f32 %v818, %v1073
        %v1079 = vsel %vm340, %v1078, 0.0
        %1080 = vadd.xlane.f32.xlu0 %v1079
        %v1081 = vpop.xlane.xlu0 %1080
        %v1082 = vmul.f32 %v1081, %v344
        %v1083 = vsub.f32 %v1078, %v1082
        %v1084 = vmul.f32 %v1083, %v1083
        %v1085 = vsel %vm340, %v1084, 0.0
        %1086 = vadd.xlane.f32.xlu0 %v1085
        %v1087 = vpop.xlane.xlu0 %1086
        %v1088 = vmul.f32 %v1087, %v344
        %v1089 = vadd.f32 %v1088, 1e-12
        %v1090 = vrsqrt.pop %v1089
        %v1091 = vmul.f32 %v1083, %v1090
        %v1092 = vlaneseq
        %v1093 = vshrl.u32 %v1092, 7
        %v1094 = vsub.s32 0, %v1093
        %v1095 = vrot.slane %v830, %v1094
        %v1096 = vmul.f32 %v1091, %v1095
        %1098 = vrot.lane.b32.xlu0 %v1095, 96
        %v1099 = vpop.permute.xlu0 %1098
        %v1101 = vadd.f32 %v1096, %v1099
        %v1102 = vpack.c.bf16 %v1101, %v1101
        %v1107 = vunpack.c.l.b16 %v832
        %v1108 = vunpack.c.l.b16 %v833
        %v1109 = vunpack.c.l.b16 %v834
        %v1110 = vunpack.c.l.b16 %v835
        %v1111 = vpack.c.b16 %v1108, %v1107
        %v1112 = vpack.c.b16 %v1110, %v1109
        %1115 = vrot.lane.b32.xlu0 %v1095, 64
        %v1116 = vpop.permute.xlu0 %1115
        %v1119 = vsel %vm340, %v1102, 0
        %1121 = vmatprep.subr.bf16.mxu0 0
        %1122 = vmatpush1.bf16.msra.mxu0 %v1111
        %1123 = vmatprep.subr.bf16.mxu0 0
        %1124 = vmatpush1.bf16.msra.mxu0 %v1112
        %1125 = vmatprep.subr.bf16.mxu0 0
        %1126 = vmatpush1.bf16.msra.mxu0 0
        %1127 = vmatprep.subr.bf16.mxu0 0
        %1128 = vmatpush1.bf16.msra.mxu0 0
        %1129 = vmatprep.subr.bf16.mxu0 0
        %1130 = vmatpush1.bf16.msra.mxu0 0
        %1131 = vmatprep.subr.bf16.mxu0 0
        %1132 = vmatpush1.bf16.msra.mxu0 0
        %1133 = vmatprep.subr.bf16.mxu0 0
        %1134 = vmatpush1.bf16.msra.mxu0 0
        %1135 = vmatprep.subr.bf16.mxu0 0
        %1136 = vmatpush1.bf16.msra.mxu0 0
        %1137 = vmatprep.subr.bf16.mxu0 0
        %1138 = vmatpush1.bf16.msra.mxu0 0
        %1139 = vmatprep.subr.bf16.mxu0 0
        %1140 = vmatpush1.bf16.msra.mxu0 0
        %1141 = vmatprep.subr.bf16.mxu0 0
        %1142 = vmatpush1.bf16.msra.mxu0 0
        %1143 = vmatprep.subr.bf16.mxu0 0
        %1144 = vmatpush1.bf16.msra.mxu0 0
        %1145 = vmatprep.subr.bf16.mxu0 0
        %1146 = vmatpush1.bf16.msra.mxu0 0
        %1147 = vmatprep.subr.bf16.mxu0 0
        %1148 = vmatpush1.bf16.msra.mxu0 0
        %1149 = vmatprep.subr.bf16.mxu0 0
        %1150 = vmatpush1.bf16.msra.mxu0 0
        %1151 = vmatprep.subr.bf16.mxu0 0
        %1152 = vmatpush1.bf16.msra.mxu0 0
        %1153 = vmatprep.mubr.bf16.mxu0 0
        %1154 = vmatmul.mubr.bf16.gmra.mrb[0].mxu0 %v1119
        %v1155 = vpop.f32.mrb[0].mxu0
        %v1156 = vadd.f32 %v1116, %v1155
        %v1157 = vpop.f32.mrb[0].mxu0
        %v1158 = vpop.f32.mrb[0].mxu0
        %v1159 = vpop.f32.mrb[0].mxu0
        %1160 = vdwg.mxu0
        %v1161 = vmul.f32 %v1156, 0.5
        %v1162 = vmul.f32 %v1156, 0.044715
        %v1163 = vmul.f32 %v1162, %v1156
        %v1164 = vmul.f32 %v1163, %v1156
        %v1165 = vadd.f32 %v1156, %v1164
        %v1166 = vmul.f32 %v1165, 0.7978846
        %v1167 = vtanh.pop %v1166
        %v1168 = vadd.f32 %v1167, 1.0
        %v1169 = vmul.f32 %v1161, %v1168
        %v1170 = vpack.c.bf16 %v1169, %v1169
        %v1171 = vlaneseq
        %v1172 = vshrl.u32 %v1171, 7
        %v1173 = vsub.s32 0, %v1172
        %v1174 = vrot.slane %v845, %v1173
        %v1183 = vunpack.c.l.b16 %v837
        %v1184 = vunpack.c.l.b16 %v838
        %v1185 = vunpack.c.l.b16 %v839
        %v1186 = vunpack.c.l.b16 %v840
        %v1187 = vunpack.c.l.b16 %v841
        %v1188 = vunpack.c.l.b16 %v842
        %v1189 = vunpack.c.l.b16 %v843
        %v1190 = vunpack.c.l.b16 %v844
        %v1191 = vpack.c.b16 %v1184, %v1183
        %v1192 = vpack.c.b16 %v1186, %v1185
        %v1193 = vpack.c.b16 %v1188, %v1187
        %v1194 = vpack.c.b16 %v1190, %v1189
        %v1200 = vsel %vm752, %v1170, 0
        %1202 = vmatprep.subr.bf16.mxu0 0
        %1203 = vmatpush1.bf16.msra.mxu0 %v1191
        %1204 = vmatprep.subr.bf16.mxu0 0
        %1205 = vmatpush1.bf16.msra.mxu0 %v1192
        %1206 = vmatprep.subr.bf16.mxu0 0
        %1207 = vmatpush1.bf16.msra.mxu0 %v1193
        %1208 = vmatprep.subr.bf16.mxu0 0
        %1209 = vmatpush1.bf16.msra.mxu0 %v1194
        %1210 = vmatprep.subr.bf16.mxu0 0
        %1211 = vmatpush1.bf16.msra.mxu0 0
        %1212 = vmatprep.subr.bf16.mxu0 0
        %1213 = vmatpush1.bf16.msra.mxu0 0
        %1214 = vmatprep.subr.bf16.mxu0 0
        %1215 = vmatpush1.bf16.msra.mxu0 0
        %1216 = vmatprep.subr.bf16.mxu0 0
        %1217 = vmatpush1.bf16.msra.mxu0 0
        %1218 = vmatprep.subr.bf16.mxu0 0
        %1219 = vmatpush1.bf16.msra.mxu0 0
        %1220 = vmatprep.subr.bf16.mxu0 0
        %1221 = vmatpush1.bf16.msra.mxu0 0
        %1222 = vmatprep.subr.bf16.mxu0 0
        %1223 = vmatpush1.bf16.msra.mxu0 0
        %1224 = vmatprep.subr.bf16.mxu0 0
        %1225 = vmatpush1.bf16.msra.mxu0 0
        %1226 = vmatprep.subr.bf16.mxu0 0
        %1227 = vmatpush1.bf16.msra.mxu0 0
        %1228 = vmatprep.subr.bf16.mxu0 0
        %1229 = vmatpush1.bf16.msra.mxu0 0
        %1230 = vmatprep.subr.bf16.mxu0 0
        %1231 = vmatpush1.bf16.msra.mxu0 0
        %1232 = vmatprep.subr.bf16.mxu0 0
        %1233 = vmatpush1.bf16.msra.mxu0 0
        %1234 = vmatprep.mubr.bf16.mxu0 0
        %1235 = vmatmul.mubr.bf16.gmra.mrb[0].mxu0 %v1200
        %v1236 = vpop.f32.mrb[0].mxu0
        %v1237 = vadd.f32 %v1174, %v1236
        %v1238 = vpop.f32.mrb[0].mxu0
        %v1239 = vpop.f32.mrb[0].mxu0
        %v1240 = vpop.f32.mrb[0].mxu0
        %1241 = vdwg.mxu0
        %v1242 = vadd.f32 %v1101, %v1237
        %v1243 = vsel %vm340, %v1242, 0.0
        %1244 = vadd.xlane.f32.xlu0 %v1243
        %v1245 = vpop.xlane.xlu0 %1244
        %v1246 = vmul.f32 %v1245, %v344
        %v1247 = vsub.f32 %v1242, %v1246
        %v1248 = vmul.f32 %v1247, %v1247
        %v1249 = vsel %vm340, %v1248, 0.0
        %1250 = vadd.xlane.f32.xlu0 %v1249
        %v1251 = vpop.xlane.xlu0 %1250
        %v1252 = vmul.f32 %v1251, %v344
        %v1253 = vadd.f32 %v1252, 1e-12
        %v1254 = vrsqrt.pop %v1253
        %v1255 = vmul.f32 %v1247, %v1254
        %1257 = vrot.lane.b32.xlu0 %v1174, 96
        %v1258 = vpop.permute.xlu0 %1257
        %v1260 = vmul.f32 %v1255, %v1258
        %1261 = vrot.lane.b32.xlu0 %v1174, 64
        %v1262 = vpop.permute.xlu0 %1261
        %v1264 = vadd.f32 %v1260, %v1262
        %v1265 = vld [vmem:[%s8] sm:$0xf]
        %v1266 = vld [vmem:[%s8 + $0x4] sm:$0xf]
        %v1267 = vld [vmem:[%s8 + $0x8] sm:$0xf]
        %v1268 = vld [vmem:[%s8 + $0xc] sm:$0xf]
        %v1269 = vpack.c.bf16 %v1264, %v1264
        %v1274 = vunpack.c.l.b16 %v1265
        %v1275 = vunpack.c.l.b16 %v1266
        %v1276 = vunpack.c.l.b16 %v1267
        %v1277 = vunpack.c.l.b16 %v1268
        %v1278 = vpack.c.b16 %v1275, %v1274
        %v1279 = vpack.c.b16 %v1277, %v1276
        %1282 = vrot.lane.b32.xlu0 %v359, 64
        %v1283 = vpop.permute.xlu0 %1282
        %v1286 = vsel %vm340, %v1269, 0
        %1288 = vmatprep.subr.bf16.mxu0 0
        %1289 = vmatpush1.bf16.msra.mxu0 %v1278
        %1290 = vmatprep.subr.bf16.mxu0 0
        %1291 = vmatpush1.bf16.msra.mxu0 %v1279
        %1292 = vmatprep.subr.bf16.mxu0 0
        %1293 = vmatpush1.bf16.msra.mxu0 0
        %1294 = vmatprep.subr.bf16.mxu0 0
        %1295 = vmatpush1.bf16.msra.mxu0 0
        %1296 = vmatprep.subr.bf16.mxu0 0
        %1297 = vmatpush1.bf16.msra.mxu0 0
        %1298 = vmatprep.subr.bf16.mxu0 0
        %1299 = vmatpush1.bf16.msra.mxu0 0
        %1300 = vmatprep.subr.bf16.mxu0 0
        %1301 = vmatpush1.bf16.msra.mxu0 0
        %1302 = vmatprep.subr.bf16.mxu0 0
        %1303 = vmatpush1.bf16.msra.mxu0 0
        %1304 = vmatprep.subr.bf16.mxu0 0
        %1305 = vmatpush1.bf16.msra.mxu0 0
        %1306 = vmatprep.subr.bf16.mxu0 0
        %1307 = vmatpush1.bf16.msra.mxu0 0
        %1308 = vmatprep.subr.bf16.mxu0 0
        %1309 = vmatpush1.bf16.msra.mxu0 0
        %1310 = vmatprep.subr.bf16.mxu0 0
        %1311 = vmatpush1.bf16.msra.mxu0 0
        %1312 = vmatprep.subr.bf16.mxu0 0
        %1313 = vmatpush1.bf16.msra.mxu0 0
        %1314 = vmatprep.subr.bf16.mxu0 0
        %1315 = vmatpush1.bf16.msra.mxu0 0
        %1316 = vmatprep.subr.bf16.mxu0 0
        %1317 = vmatpush1.bf16.msra.mxu0 0
        %1318 = vmatprep.subr.bf16.mxu0 0
        %1319 = vmatpush1.bf16.msra.mxu0 0
        %1320 = vmatprep.mubr.bf16.mxu0 0
        %1321 = vmatmul.mubr.bf16.gmra.mrb[0].mxu0 %v1286
        %v1322 = vpop.f32.mrb[0].mxu0
        %v1323 = vadd.f32 %v1283, %v1322
        %v1324 = vpop.f32.mrb[0].mxu0
        %v1325 = vpop.f32.mrb[0].mxu0
        %v1326 = vpop.f32.mrb[0].mxu0
        %1327 = vdwg.mxu0
        %v1328 = vtanh.pop %v1323
        %v1329 = vpack.c.bf16 %v1328, %v1328
        %1330 = vrot.lane.b32.xlu0 %v1278, 96
        %v1331 = vpop.permute.xlu0 %1330
        %1332 = vrot.lane.b32.xlu0 %v1279, 96
        %v1333 = vpop.permute.xlu0 %1332
        %1336 = vrot.lane.b32.xlu0 %v359, 32
        %v1337 = vpop.permute.xlu0 %1336
        %v1340 = vsel %vm340, %v1329, 0
        %1342 = vmatprep.subr.bf16.mxu0 0
        %1343 = vmatpush1.bf16.msra.mxu0 %v1331
        %1344 = vmatprep.subr.bf16.mxu0 0
        %1345 = vmatpush1.bf16.msra.mxu0 %v1333
        %1346 = vmatprep.subr.bf16.mxu0 0
        %1347 = vmatpush1.bf16.msra.mxu0 0
        %1348 = vmatprep.subr.bf16.mxu0 0
        %1349 = vmatpush1.bf16.msra.mxu0 0
        %1350 = vmatprep.subr.bf16.mxu0 0
        %1351 = vmatpush1.bf16.msra.mxu0 0
        %1352 = vmatprep.subr.bf16.mxu0 0
        %1353 = vmatpush1.bf16.msra.mxu0 0
        %1354 = vmatprep.subr.bf16.mxu0 0
        %1355 = vmatpush1.bf16.msra.mxu0 0
        %1356 = vmatprep.subr.bf16.mxu0 0
        %1357 = vmatpush1.bf16.msra.mxu0 0
        %1358 = vmatprep.subr.bf16.mxu0 0
        %1359 = vmatpush1.bf16.msra.mxu0 0
        %1360 = vmatprep.subr.bf16.mxu0 0
        %1361 = vmatpush1.bf16.msra.mxu0 0
        %1362 = vmatprep.subr.bf16.mxu0 0
        %1363 = vmatpush1.bf16.msra.mxu0 0
        %1364 = vmatprep.subr.bf16.mxu0 0
        %1365 = vmatpush1.bf16.msra.mxu0 0
        %1366 = vmatprep.subr.bf16.mxu0 0
        %1367 = vmatpush1.bf16.msra.mxu0 0
        %1368 = vmatprep.subr.bf16.mxu0 0
        %1369 = vmatpush1.bf16.msra.mxu0 0
        %1370 = vmatprep.subr.bf16.mxu0 0
        %1371 = vmatpush1.bf16.msra.mxu0 0
        %1372 = vmatprep.subr.bf16.mxu0 0
        %1373 = vmatpush1.bf16.msra.mxu0 0
        %1374 = vmatprep.mubr.bf16.mxu0 0
        %1375 = vmatmul.mubr.bf16.gmra.mrb[0].mxu0 %v1340
        %v1376 = vpop.f32.mrb[0].mxu0
        %v1377 = vadd.f32 %v1337, %v1376
        %v1378 = vpop.f32.mrb[0].mxu0
        %v1379 = vpop.f32.mrb[0].mxu0
        %v1380 = vpop.f32.mrb[0].mxu0
        %1381 = vdwg.mxu0
        %vm1382 = vcmask 0
        %1383 = vst.msk [vmem:[%s336] sm:$0x1] %vm1382, %v1377
        %p1384 = scmp.lt.s32.totalorder %s28, 1
        %s1385 = scalar_select %p1384, %s28, 1
        %s1386 = scalar_lea.vmem %s9, %s1385
        // Predicated region
        $region61: #{tpu_custom_call.1} parent=51 // pred_check
          %p1387 = pneg %p219
        $region62: #{tpu_custom_call.1} parent=51 // pred_check_branch
          %1389 = sbr.rel (%p1387) target = $region64
        $region63: #{tpu_custom_call.1} parent=51 // pred_region
          _
        $region64: #{tpu_custom_call.1} parent=51 // pred_fallthru
          _
      $region52: #{tpu_custom_call.1} parent=5 // pred_fallthru
        _
      %p1390 = scmp.le.s32.totalorder 2, %s23
      // Predicated region
      $region65: #{tpu_custom_call.1} parent=5 // pred_check
        %p1391 = pneg %p1390
      $region66: #{tpu_custom_call.1} parent=5 // pred_check_branch
        %1393 = sbr.rel (%p1391) target = $region68
      $region67: #{tpu_custom_call.1} parent=5 // pred_region
        %s1394 = ssub.s32 %s23, 2
        // Predicated region
        $region69: #{tpu_custom_call.1} parent=67 // pred_check
          %p1395 = pneg %p225
        $region70: #{tpu_custom_call.1} parent=67 // pred_check_branch
          %1397 = sbr.rel (%p1395) target = $region72
        $region71: #{tpu_custom_call.1} parent=67 // pred_region
          %p1398 = scmp.lt.s32.totalorder %s29, 1
          %s1399 = scalar_select %p1398, %s29, 1
          %s1400 = scalar_lea.vmem %s9, %s1399
        $region72: #{tpu_custom_call.1} parent=67 // pred_fallthru
          _
      $region68: #{tpu_custom_call.1} parent=5 // pred_fallthru
        _
    $region6: #{tpu_custom_call.1} parent=1 // loop_footer
      %s27 = sadd.s32 1, %s23
    $region7: #{tpu_custom_call.1} parent=1 // loop_footer_branch
      %22 = sbr.rel target = $region3
    $region8: #{tpu_custom_call.1} parent=1 // loop_exit
      _
    %1401 = vsyncpa [#allocation5], 1
    %s1402 = scalar_lea.sflag [#allocation5], 1
    %1403 = vsyncpa %s1402, 1
    %1404 = vsyncpa [#allocation7], 1

</llo_original>
